<compile_context>
chip_gen: v7x
topology: tpu7x:2x2x1
jax: 0.10.0
libtpu: 0.0.40
codegen_flags: <defaults>
</compile_context>

<pallas_src>
import functools

import jax
import jax.numpy as jnp
from jax import lax
from jax.experimental import pallas as pl
from jax.experimental.pallas import tpu as pltpu


def rnn_lstm_fc_kernel(ids_ref, emb_ref, w_int_ref, b_int_ref, w_rec_ref,
                       w_fc_ref, b_fc_ref, out_ref, h1_ref,
                       *, hidden_dim: int, vocab_len: int):
    """Whole forward pass on one TensorCore.

    ids_ref:   (T, 1)    int32  token ids
    emb_ref:   (V, E)    bf16   embedding table
    w_int_ref: (E, 8H)   bf16   layer-0 input weights, gate-interleaved (layer-1 cols = 0)
    b_int_ref: (1, 8H)   f32    interleaved bias [b0 | b1]
    w_rec_ref: (2H, 8H)  bf16   fused block-diagonal recurrent weight
                                rows [0:H]  -> [W_hh0 | W_ih1] (interleaved)
                                rows [H:2H] -> [  0   | W_hh1] (interleaved)
    w_fc_ref:  (H, Vp)   bf16   fc weight (vocab padded to Vp lanes)
    b_fc_ref:  (1, Vp)   f32    fc bias (padded)
    out_ref:   (T, Vp)   f32    log_softmax(relu(fc(h1_t)))
    h1_ref:    (T, H)    f32    scratch: layer-1 hidden states (for the batched fc)
    """
    H = hidden_dim
    T = out_ref.shape[0]
    Vp = out_ref.shape[1]
    V = emb_ref.shape[0]

    # ---- embedding gather fused in-kernel: one-hot MXU matmul (no dynamic indexing)
    ids = ids_ref[...]                                             # (T, 1) int32
    tok_iota = lax.broadcasted_iota(jnp.int32, (T, V), 1)
    onehot = jnp.where(tok_iota == ids, 1.0, 0.0).astype(jnp.bfloat16)
    x = jnp.dot(onehot, emb_ref[...],
                preferred_element_type=jnp.float32)                # (T, E) f32

    # ---- batched layer-0 input projection in the interleaved-gate layout --------
    # xp_int lanes: [i0 i1 f0 f1 g0 g1 o0 o1].  Layer-1 columns of w_int are zero,
    # so the layer-1 lanes of EVERY row equal b1 — handy at the last wavefront.
    xp_int = (jnp.dot(x.astype(jnp.bfloat16), w_int_ref[...],
                      preferred_element_type=jnp.float32)
              + b_int_ref[...])                                    # (T, 8H) f32, in vregs

    w_rec = w_rec_ref[...]                                         # (2H, 8H) bf16

    def fused_cell(gates, c_cat):
        # gates (1,8H) interleaved; c_cat / h_cat are (1,2H) = [layer0 | layer1].
        sg_if = jax.nn.sigmoid(gates[:, 0:4 * H])                  # [i0 i1 f0 f1]
        g = jnp.tanh(gates[:, 4 * H:6 * H])                        # [g0 g1]
        o = jax.nn.sigmoid(gates[:, 6 * H:8 * H])                  # [o0 o1]
        i = sg_if[:, 0:2 * H]
        f = sg_if[:, 2 * H:4 * H]
        c_new = f * c_cat + i * g
        h_new = o * jnp.tanh(c_new)
        return h_new, c_new

    # Wavefront 0: layer-0 step 0 only.  Both states are zero, so the recurrent
    # matmul is skipped and the layer-1 half of the joint update is masked off.
    lane2h = lax.broadcasted_iota(jnp.int32, (1, 2 * H), 1)
    l0_mask = (lane2h < H).astype(jnp.float32)
    h_cat, c_cat = fused_cell(xp_int[0:1, :],
                              jnp.zeros((1, 2 * H), jnp.float32))
    h_cat = h_cat * l0_mask
    c_cat = c_cat * l0_mask

    # Wavefronts 1..T: one fused (1,2H)@(2H,8H) matmul per step advances layer 0
    # to step s and layer 1 to step s-1.  Fully unrolled (T is small and static).
    for s in range(1, T + 1):
        fused = jnp.dot(h_cat.astype(jnp.bfloat16), w_rec,
                        preferred_element_type=jnp.float32)        # (1, 8H)
        row = min(s, T - 1)   # at s == T only the layer-1 lanes (== b1) are used
        gates = xp_int[row:row + 1, :] + fused
        h_cat, c_cat = fused_cell(gates, c_cat)
        # layer-1 hidden state for output step s-1; store is off the critical path.
        h1_ref[pl.ds(s - 1, 1), :] = h_cat[:, H:2 * H]

    # ---- fc + relu + log_softmax, batched over the whole (T, Vp) block ----------
    logits = (jnp.dot(h1_ref[...].astype(jnp.bfloat16), w_fc_ref[...],
                      preferred_element_type=jnp.float32)
              + b_fc_ref[...])
    act = jnp.maximum(logits, 0.0)
    lane = lax.broadcasted_iota(jnp.int32, (T, Vp), 1)
    act = jnp.where(lane < vocab_len, act, -1e30)     # exclude padded vocab lanes
    m = jnp.max(act, axis=1, keepdims=True)
    shifted = act - m
    lse = jnp.log(jnp.sum(jnp.exp(shifted), axis=1, keepdims=True))
    out_ref[...] = shifted - lse                      # single lane-dense store


# ------------------------------ parameter handling ------------------------------

def init_params(key, vocab_len, embedding_dim, hidden_dim):
    """Deterministic synthetic parameters matching the PyTorch module's shapes."""
    ks = jax.random.split(key, 12)
    H, E, V = hidden_dim, embedding_dim, vocab_len
    lstm_bound = 1.0 / jnp.sqrt(jnp.float32(H))        # nn.LSTM default init
    fc_bound = jnp.sqrt(6.0 / (H + V))                 # weights_init for nn.Linear

    def u(k, shape, bound):
        return jax.random.uniform(k, shape, jnp.float32, -bound, bound)

    return {
        "embedding": u(ks[0], (V, E), 0.1),
        # layer 0 (input size E); PyTorch gate order [i, f, g, o]
        "w_ih0_t": u(ks[1], (4 * H, E), lstm_bound).T,
        "w_hh0_t": u(ks[2], (4 * H, H), lstm_bound).T,
        "b0": (u(ks[3], (4 * H,), lstm_bound)
               + u(ks[4], (4 * H,), lstm_bound)).reshape(1, 4 * H),
        # layer 1 (input size H)
        "w_ih1_t": u(ks[5], (4 * H, H), lstm_bound).T,
        "w_hh1_t": u(ks[6], (4 * H, H), lstm_bound).T,
        "b1": (u(ks[7], (4 * H,), lstm_bound)
               + u(ks[8], (4 * H,), lstm_bound)).reshape(1, 4 * H),
        # fc (weights_init: uniform weight, zero bias)
        "w_fc_t": u(ks[9], (V, H), fc_bound).T,
        "b_fc": jnp.zeros((1, V), jnp.float32),
    }


def _interleave_gate_cols(a, b, H):
    """Interleave gate blocks of two (*, 4H) matrices -> (*, 8H): [iA iB fA fB gA gB oA oB]."""
    cols = []
    for g in range(4):
        cols.append(a[..., g * H:(g + 1) * H])
        cols.append(b[..., g * H:(g + 1) * H])
    return jnp.concatenate(cols, axis=-1)


def fuse_params(params):
    """One-time construction of the kernel operands (fused / interleaved weights)."""
    H = params["w_hh0_t"].shape[0]
    E = params["w_ih0_t"].shape[0]
    V = params["w_fc_t"].shape[1]
    Vp = ((V + 127) // 128) * 128

    zeros_e = jnp.zeros((E, 4 * H), jnp.float32)
    zeros_h = jnp.zeros((H, 4 * H), jnp.float32)

    w_int = _interleave_gate_cols(params["w_ih0_t"], zeros_e, H)            # (E, 8H)
    b_int = _interleave_gate_cols(params["b0"], params["b1"], H)            # (1, 8H)
    w_rec_top = _interleave_gate_cols(params["w_hh0_t"], params["w_ih1_t"], H)
    w_rec_bot = _interleave_gate_cols(zeros_h, params["w_hh1_t"], H)
    w_rec = jnp.concatenate([w_rec_top, w_rec_bot], axis=0)                 # (2H, 8H)

    return {
        "emb": params["embedding"].astype(jnp.bfloat16),
        "w_int": w_int.astype(jnp.bfloat16),
        "b_int": b_int.astype(jnp.float32),
        "w_rec": w_rec.astype(jnp.bfloat16),
        "w_fc": jnp.pad(params["w_fc_t"], ((0, 0), (0, Vp - V))).astype(jnp.bfloat16),
        "b_fc": jnp.pad(params["b_fc"], ((0, 0), (0, Vp - V))).astype(jnp.float32),
    }


# ----------------------------------- forward ------------------------------------

@functools.partial(jax.jit, static_argnames=("vocab_len",))
def rnn_model_forward(sentence, fused, *, vocab_len):
    """Equivalent of RNN_model.forward(sentence, is_test=False): returns (T, vocab_len)."""
    ids = sentence.reshape(-1)[:, None].astype(jnp.int32)   # view(1,-1,E) -> batch 1, T tokens
    T = ids.shape[0]
    H = fused["w_rec"].shape[0] // 2
    Vp = fused["w_fc"].shape[1]

    kernel = functools.partial(rnn_lstm_fc_kernel, hidden_dim=H, vocab_len=vocab_len)
    vmem = pl.BlockSpec(memory_space=pltpu.MemorySpace.VMEM)

    out = pl.pallas_call(
        kernel,
        out_shape=jax.ShapeDtypeStruct((T, Vp), jnp.float32),
        in_specs=[vmem] * 7,
        out_specs=vmem,
        scratch_shapes=[
            pltpu.VMEM((T, H), jnp.float32),                 # layer-1 hidden states
        ],
    )(ids, fused["emb"], fused["w_int"], fused["b_int"], fused["w_rec"],
      fused["w_fc"], fused["b_fc"])
    return out[:, :vocab_len]


@jax.jit
def rnn_model_forward_ref(sentence, params):
    """Pure-JAX reference (mirrors the kernel's bf16-operand / f32-accumulate matmuls)."""
    H = params["w_hh0_t"].shape[0]
    emb = jnp.take(params["embedding"], sentence.reshape(-1), axis=0)       # (T, E)
    T = emb.shape[0]

    def cell(x, h, c, w_ih_t, w_hh_t, b):
        gates = (jnp.dot(x.astype(jnp.bfloat16), w_ih_t.astype(jnp.bfloat16),
                         preferred_element_type=jnp.float32)
                 + jnp.dot(h.astype(jnp.bfloat16), w_hh_t.astype(jnp.bfloat16),
                           preferred_element_type=jnp.float32)
                 + b)
        i, f, g, o = jnp.split(gates, 4, axis=1)
        c_new = jax.nn.sigmoid(f) * c + jax.nn.sigmoid(i) * jnp.tanh(g)
        h_new = jax.nn.sigmoid(o) * jnp.tanh(c_new)
        return h_new, c_new

    h0 = c0 = h1 = c1 = jnp.zeros((1, H), jnp.float32)
    rows = []
    for t in range(T):
        h0, c0 = cell(emb[t:t + 1], h0, c0,
                      params["w_ih0_t"], params["w_hh0_t"], params["b0"])
        h1, c1 = cell(h0, h1, c1,
                      params["w_ih1_t"], params["w_hh1_t"], params["b1"])
        rows.append(h1)
    hs = jnp.concatenate(rows, axis=0)                                      # (T, H)
    logits = (jnp.dot(hs.astype(jnp.bfloat16), params["w_fc_t"].astype(jnp.bfloat16),
                      preferred_element_type=jnp.float32) + params["b_fc"])
    return jax.nn.log_softmax(jax.nn.relu(logits), axis=1)


if __name__ == "__main__":
    vocab_len = 64
    embedding_dim = 32
    lstm_hidden_dim = 32
    seq_len = 8

    key = jax.random.PRNGKey(0)
    k_params, k_tokens = jax.random.split(key)
    params = init_params(k_params, vocab_len, embedding_dim, lstm_hidden_dim)
    fused = fuse_params(params)

    sentence = jax.random.randint(k_tokens, (1, seq_len), 0, vocab_len, dtype=jnp.int32)

    out = rnn_model_forward(sentence, fused, vocab_len=vocab_len)
    out = jax.block_until_ready(out)

    assert out.shape == (seq_len, vocab_len)
    # log_softmax rows should exponentiate-sum to 1.
    assert bool(jnp.all(jnp.abs(jnp.sum(jnp.exp(out), axis=1) - 1.0) < 1e-4))
    # Match the pure-JAX reference of the same forward pass.
    ref = rnn_model_forward_ref(sentence, params)
    assert bool(jnp.max(jnp.abs(out - ref)) < 1e-2)
    print("KERNEL_OK")
</pallas_src>

<mosaic_0001>
module attributes {stable_mosaic.version = 11 : i64} {
  func.func @rnn_lstm_fc_kernel(%arg0: memref<8x1xi32, #tpu.memory_space<vmem>>, %arg1: memref<64x32xbf16, #tpu.memory_space<vmem>>, %arg2: memref<32x256xbf16, #tpu.memory_space<vmem>>, %arg3: memref<1x256xf32, #tpu.memory_space<vmem>>, %arg4: memref<64x256xbf16, #tpu.memory_space<vmem>>, %arg5: memref<32x128xbf16, #tpu.memory_space<vmem>>, %arg6: memref<1x128xf32, #tpu.memory_space<vmem>>, %arg7: memref<8x128xf32, #tpu.memory_space<vmem>>, %arg8: memref<8x32xf32, #tpu.memory_space<vmem>>) attributes {dimension_semantics = [], scalar_prefetch = 0 : i64, scratch_operands = 1 : i64, tpu.core_type = #tpu.core_type<tc>} {
    %c0 = arith.constant 0 : index
    %c0_0 = arith.constant 0 : index
    %0 = vector.load %arg0[%c0, %c0_0] : memref<8x1xi32, #tpu.memory_space<vmem>>, vector<8x1xi32>
    %1 = tpu.iota {dimensions = array<i32: 1>} : vector<8x64xi32>
    %2 = vector.broadcast %0 : vector<8x1xi32> to vector<8x64xi32>
    %3 = arith.cmpi eq, %1, %2 : vector<8x64xi32>
    %cst = arith.constant 1.000000e+00 : f32
    %cst_1 = arith.constant 0.000000e+00 : f32
    %4 = vector.broadcast %cst : f32 to vector<8x64xf32>
    %5 = vector.broadcast %cst_1 : f32 to vector<8x64xf32>
    %6 = arith.select %3, %4, %5 : vector<8x64xi1>, vector<8x64xf32>
    %7 = arith.truncf %6 : vector<8x64xf32> to vector<8x64xbf16>
    %c0_2 = arith.constant 0 : index
    %c0_3 = arith.constant 0 : index
    %8 = vector.load %arg1[%c0_2, %c0_3] : memref<64x32xbf16, #tpu.memory_space<vmem>>, vector<64x32xbf16>
    %cst_4 = arith.constant dense<0.000000e+00> : vector<8x32xf32>
    %9 = tpu.matmul %7, %8, %cst_4 {dimension_numbers = #tpu.dot_dimension_numbers<[1], [0], [0], [1], [0, 0, 1, 1], [], []>} : vector<8x64xbf16>, vector<64x32xbf16>, vector<8x32xf32> -> vector<8x32xf32>
    %10 = arith.truncf %9 : vector<8x32xf32> to vector<8x32xbf16>
    %c0_5 = arith.constant 0 : index
    %c0_6 = arith.constant 0 : index
    %11 = vector.load %arg2[%c0_5, %c0_6] : memref<32x256xbf16, #tpu.memory_space<vmem>>, vector<32x256xbf16>
    %cst_7 = arith.constant dense<0.000000e+00> : vector<8x256xf32>
    %12 = tpu.matmul %10, %11, %cst_7 {dimension_numbers = #tpu.dot_dimension_numbers<[1], [0], [0], [1], [0, 0, 1, 1], [], []>} : vector<8x32xbf16>, vector<32x256xbf16>, vector<8x256xf32> -> vector<8x256xf32>
    %c0_8 = arith.constant 0 : index
    %c0_9 = arith.constant 0 : index
    %13 = vector.load %arg3[%c0_8, %c0_9] : memref<1x256xf32, #tpu.memory_space<vmem>>, vector<1x256xf32>
    %14 = vector.broadcast %13 : vector<1x256xf32> to vector<8x256xf32>
    %15 = arith.addf %12, %14 : vector<8x256xf32>
    %c0_10 = arith.constant 0 : index
    %c0_11 = arith.constant 0 : index
    %16 = vector.load %arg4[%c0_10, %c0_11] : memref<64x256xbf16, #tpu.memory_space<vmem>>, vector<64x256xbf16>
    %17 = tpu.iota {dimensions = array<i32: 1>} : vector<1x64xi32>
    %c32_i32 = arith.constant 32 : i32
    %18 = vector.broadcast %c32_i32 : i32 to vector<1x64xi32>
    %19 = arith.cmpi slt, %17, %18 : vector<1x64xi32>
    %20 = arith.extui %19 : vector<1x64xi1> to vector<1x64xi32>
    %21 = arith.sitofp %20 : vector<1x64xi32> to vector<1x64xf32>
    %22 = vector.extract_strided_slice %15 {offsets = [0, 0], sizes = [1, 256], strides = [1, 1]} : vector<8x256xf32> to vector<1x256xf32>
    %cst_12 = arith.constant 0.000000e+00 : f32
    %23 = vector.broadcast %cst_12 : f32 to vector<1x64xf32>
    %24 = vector.extract_strided_slice %22 {offsets = [0, 0], sizes = [1, 128], strides = [1, 1]} : vector<1x256xf32> to vector<1x128xf32>
    %25 = arith.negf %24 : vector<1x128xf32>
    %26 = math.exp %25 : vector<1x128xf32>
    %cst_13 = arith.constant 1.000000e+00 : f32
    %27 = vector.broadcast %cst_13 : f32 to vector<1x128xf32>
    %28 = arith.addf %27, %26 : vector<1x128xf32>
    %29 = arith.divf %27, %28 : vector<1x128xf32>
    %30 = vector.extract_strided_slice %22 {offsets = [0, 128], sizes = [1, 64], strides = [1, 1]} : vector<1x256xf32> to vector<1x64xf32>
    %31 = math.tanh %30 : vector<1x64xf32>
    %32 = vector.extract_strided_slice %22 {offsets = [0, 192], sizes = [1, 64], strides = [1, 1]} : vector<1x256xf32> to vector<1x64xf32>
    %33 = arith.negf %32 : vector<1x64xf32>
    %34 = math.exp %33 : vector<1x64xf32>
    %cst_14 = arith.constant 1.000000e+00 : f32
    %35 = vector.broadcast %cst_14 : f32 to vector<1x64xf32>
    %36 = arith.addf %35, %34 : vector<1x64xf32>
    %37 = arith.divf %35, %36 : vector<1x64xf32>
    %38 = vector.extract_strided_slice %29 {offsets = [0, 0], sizes = [1, 64], strides = [1, 1]} : vector<1x128xf32> to vector<1x64xf32>
    %39 = vector.extract_strided_slice %29 {offsets = [0, 64], sizes = [1, 64], strides = [1, 1]} : vector<1x128xf32> to vector<1x64xf32>
    %40 = arith.mulf %39, %23 : vector<1x64xf32>
    %41 = arith.mulf %38, %31 : vector<1x64xf32>
    %42 = arith.addf %40, %41 : vector<1x64xf32>
    %43 = math.tanh %42 : vector<1x64xf32>
    %44 = arith.mulf %37, %43 : vector<1x64xf32>
    %45 = arith.mulf %44, %21 : vector<1x64xf32>
    %46 = arith.mulf %42, %21 : vector<1x64xf32>
    %47 = arith.truncf %45 : vector<1x64xf32> to vector<1x64xbf16>
    %cst_15 = arith.constant dense<0.000000e+00> : vector<1x256xf32>
    %48 = tpu.matmul %47, %16, %cst_15 {dimension_numbers = #tpu.dot_dimension_numbers<[1], [0], [0], [1], [0, 0, 1, 1], [], []>} : vector<1x64xbf16>, vector<64x256xbf16>, vector<1x256xf32> -> vector<1x256xf32>
    %49 = vector.extract_strided_slice %15 {offsets = [1, 0], sizes = [1, 256], strides = [1, 1]} : vector<8x256xf32> to vector<1x256xf32>
    %50 = arith.addf %49, %48 : vector<1x256xf32>
    %51 = vector.extract_strided_slice %50 {offsets = [0, 0], sizes = [1, 128], strides = [1, 1]} : vector<1x256xf32> to vector<1x128xf32>
    %52 = arith.negf %51 : vector<1x128xf32>
    %53 = math.exp %52 : vector<1x128xf32>
    %cst_16 = arith.constant 1.000000e+00 : f32
    %54 = vector.broadcast %cst_16 : f32 to vector<1x128xf32>
    %55 = arith.addf %54, %53 : vector<1x128xf32>
    %56 = arith.divf %54, %55 : vector<1x128xf32>
    %57 = vector.extract_strided_slice %50 {offsets = [0, 128], sizes = [1, 64], strides = [1, 1]} : vector<1x256xf32> to vector<1x64xf32>
    %58 = math.tanh %57 : vector<1x64xf32>
    %59 = vector.extract_strided_slice %50 {offsets = [0, 192], sizes = [1, 64], strides = [1, 1]} : vector<1x256xf32> to vector<1x64xf32>
    %60 = arith.negf %59 : vector<1x64xf32>
    %61 = math.exp %60 : vector<1x64xf32>
    %cst_17 = arith.constant 1.000000e+00 : f32
    %62 = vector.broadcast %cst_17 : f32 to vector<1x64xf32>
    %63 = arith.addf %62, %61 : vector<1x64xf32>
    %64 = arith.divf %62, %63 : vector<1x64xf32>
    %65 = vector.extract_strided_slice %56 {offsets = [0, 0], sizes = [1, 64], strides = [1, 1]} : vector<1x128xf32> to vector<1x64xf32>
    %66 = vector.extract_strided_slice %56 {offsets = [0, 64], sizes = [1, 64], strides = [1, 1]} : vector<1x128xf32> to vector<1x64xf32>
    %67 = arith.mulf %66, %46 : vector<1x64xf32>
    %68 = arith.mulf %65, %58 : vector<1x64xf32>
    %69 = arith.addf %67, %68 : vector<1x64xf32>
    %70 = math.tanh %69 : vector<1x64xf32>
    %71 = arith.mulf %64, %70 : vector<1x64xf32>
    %72 = vector.extract_strided_slice %71 {offsets = [0, 32], sizes = [1, 32], strides = [1, 1]} : vector<1x64xf32> to vector<1x32xf32>
    %c0_18 = arith.constant 0 : index
    %c0_19 = arith.constant 0 : index
    %73 = vector.load %arg8[%c0_18, %c0_19] : memref<8x32xf32, #tpu.memory_space<vmem>>, vector<1x32xf32>
    tpu.vector_store %arg8[%c0_18, %c0_19], %72 {strides = array<i32>} : memref<8x32xf32, #tpu.memory_space<vmem>>, vector<1x32xf32>,
    %74 = arith.truncf %71 : vector<1x64xf32> to vector<1x64xbf16>
    %cst_20 = arith.constant dense<0.000000e+00> : vector<1x256xf32>
    %75 = tpu.matmul %74, %16, %cst_20 {dimension_numbers = #tpu.dot_dimension_numbers<[1], [0], [0], [1], [0, 0, 1, 1], [], []>} : vector<1x64xbf16>, vector<64x256xbf16>, vector<1x256xf32> -> vector<1x256xf32>
    %76 = vector.extract_strided_slice %15 {offsets = [2, 0], sizes = [1, 256], strides = [1, 1]} : vector<8x256xf32> to vector<1x256xf32>
    %77 = arith.addf %76, %75 : vector<1x256xf32>
    %78 = vector.extract_strided_slice %77 {offsets = [0, 0], sizes = [1, 128], strides = [1, 1]} : vector<1x256xf32> to vector<1x128xf32>
    %79 = arith.negf %78 : vector<1x128xf32>
    %80 = math.exp %79 : vector<1x128xf32>
    %cst_21 = arith.constant 1.000000e+00 : f32
    %81 = vector.broadcast %cst_21 : f32 to vector<1x128xf32>
    %82 = arith.addf %81, %80 : vector<1x128xf32>
    %83 = arith.divf %81, %82 : vector<1x128xf32>
    %84 = vector.extract_strided_slice %77 {offsets = [0, 128], sizes = [1, 64], strides = [1, 1]} : vector<1x256xf32> to vector<1x64xf32>
    %85 = math.tanh %84 : vector<1x64xf32>
    %86 = vector.extract_strided_slice %77 {offsets = [0, 192], sizes = [1, 64], strides = [1, 1]} : vector<1x256xf32> to vector<1x64xf32>
    %87 = arith.negf %86 : vector<1x64xf32>
    %88 = math.exp %87 : vector<1x64xf32>
    %cst_22 = arith.constant 1.000000e+00 : f32
    %89 = vector.broadcast %cst_22 : f32 to vector<1x64xf32>
    %90 = arith.addf %89, %88 : vector<1x64xf32>
    %91 = arith.divf %89, %90 : vector<1x64xf32>
    %92 = vector.extract_strided_slice %83 {offsets = [0, 0], sizes = [1, 64], strides = [1, 1]} : vector<1x128xf32> to vector<1x64xf32>
    %93 = vector.extract_strided_slice %83 {offsets = [0, 64], sizes = [1, 64], strides = [1, 1]} : vector<1x128xf32> to vector<1x64xf32>
    %94 = arith.mulf %93, %69 : vector<1x64xf32>
    %95 = arith.mulf %92, %85 : vector<1x64xf32>
    %96 = arith.addf %94, %95 : vector<1x64xf32>
    %97 = math.tanh %96 : vector<1x64xf32>
    %98 = arith.mulf %91, %97 : vector<1x64xf32>
    %99 = vector.extract_strided_slice %98 {offsets = [0, 32], sizes = [1, 32], strides = [1, 1]} : vector<1x64xf32> to vector<1x32xf32>
    %c1 = arith.constant 1 : index
    %c0_23 = arith.constant 0 : index
    %100 = vector.load %arg8[%c1, %c0_23] : memref<8x32xf32, #tpu.memory_space<vmem>>, vector<1x32xf32>
    tpu.vector_store %arg8[%c1, %c0_23], %99 {strides = array<i32>} : memref<8x32xf32, #tpu.memory_space<vmem>>, vector<1x32xf32>,
    %101 = arith.truncf %98 : vector<1x64xf32> to vector<1x64xbf16>
    %cst_24 = arith.constant dense<0.000000e+00> : vector<1x256xf32>
    %102 = tpu.matmul %101, %16, %cst_24 {dimension_numbers = #tpu.dot_dimension_numbers<[1], [0], [0], [1], [0, 0, 1, 1], [], []>} : vector<1x64xbf16>, vector<64x256xbf16>, vector<1x256xf32> -> vector<1x256xf32>
    %103 = vector.extract_strided_slice %15 {offsets = [3, 0], sizes = [1, 256], strides = [1, 1]} : vector<8x256xf32> to vector<1x256xf32>
    %104 = arith.addf %103, %102 : vector<1x256xf32>
    %105 = vector.extract_strided_slice %104 {offsets = [0, 0], sizes = [1, 128], strides = [1, 1]} : vector<1x256xf32> to vector<1x128xf32>
    %106 = arith.negf %105 : vector<1x128xf32>
    %107 = math.exp %106 : vector<1x128xf32>
    %cst_25 = arith.constant 1.000000e+00 : f32
    %108 = vector.broadcast %cst_25 : f32 to vector<1x128xf32>
    %109 = arith.addf %108, %107 : vector<1x128xf32>
    %110 = arith.divf %108, %109 : vector<1x128xf32>
    %111 = vector.extract_strided_slice %104 {offsets = [0, 128], sizes = [1, 64], strides = [1, 1]} : vector<1x256xf32> to vector<1x64xf32>
    %112 = math.tanh %111 : vector<1x64xf32>
    %113 = vector.extract_strided_slice %104 {offsets = [0, 192], sizes = [1, 64], strides = [1, 1]} : vector<1x256xf32> to vector<1x64xf32>
    %114 = arith.negf %113 : vector<1x64xf32>
    %115 = math.exp %114 : vector<1x64xf32>
    %cst_26 = arith.constant 1.000000e+00 : f32
    %116 = vector.broadcast %cst_26 : f32 to vector<1x64xf32>
    %117 = arith.addf %116, %115 : vector<1x64xf32>
    %118 = arith.divf %116, %117 : vector<1x64xf32>
    %119 = vector.extract_strided_slice %110 {offsets = [0, 0], sizes = [1, 64], strides = [1, 1]} : vector<1x128xf32> to vector<1x64xf32>
    %120 = vector.extract_strided_slice %110 {offsets = [0, 64], sizes = [1, 64], strides = [1, 1]} : vector<1x128xf32> to vector<1x64xf32>
    %121 = arith.mulf %120, %96 : vector<1x64xf32>
    %122 = arith.mulf %119, %112 : vector<1x64xf32>
    %123 = arith.addf %121, %122 : vector<1x64xf32>
    %124 = math.tanh %123 : vector<1x64xf32>
    %125 = arith.mulf %118, %124 : vector<1x64xf32>
    %126 = vector.extract_strided_slice %125 {offsets = [0, 32], sizes = [1, 32], strides = [1, 1]} : vector<1x64xf32> to vector<1x32xf32>
    %c2 = arith.constant 2 : index
    %c0_27 = arith.constant 0 : index
    %127 = vector.load %arg8[%c2, %c0_27] : memref<8x32xf32, #tpu.memory_space<vmem>>, vector<1x32xf32>
    tpu.vector_store %arg8[%c2, %c0_27], %126 {strides = array<i32>} : memref<8x32xf32, #tpu.memory_space<vmem>>, vector<1x32xf32>,
    %128 = arith.truncf %125 : vector<1x64xf32> to vector<1x64xbf16>
    %cst_28 = arith.constant dense<0.000000e+00> : vector<1x256xf32>
    %129 = tpu.matmul %128, %16, %cst_28 {dimension_numbers = #tpu.dot_dimension_numbers<[1], [0], [0], [1], [0, 0, 1, 1], [], []>} : vector<1x64xbf16>, vector<64x256xbf16>, vector<1x256xf32> -> vector<1x256xf32>
    %130 = vector.extract_strided_slice %15 {offsets = [4, 0], sizes = [1, 256], strides = [1, 1]} : vector<8x256xf32> to vector<1x256xf32>
    %131 = arith.addf %130, %129 : vector<1x256xf32>
    %132 = vector.extract_strided_slice %131 {offsets = [0, 0], sizes = [1, 128], strides = [1, 1]} : vector<1x256xf32> to vector<1x128xf32>
    %133 = arith.negf %132 : vector<1x128xf32>
    %134 = math.exp %133 : vector<1x128xf32>
    %cst_29 = arith.constant 1.000000e+00 : f32
    %135 = vector.broadcast %cst_29 : f32 to vector<1x128xf32>
    %136 = arith.addf %135, %134 : vector<1x128xf32>
    %137 = arith.divf %135, %136 : vector<1x128xf32>
    %138 = vector.extract_strided_slice %131 {offsets = [0, 128], sizes = [1, 64], strides = [1, 1]} : vector<1x256xf32> to vector<1x64xf32>
    %139 = math.tanh %138 : vector<1x64xf32>
    %140 = vector.extract_strided_slice %131 {offsets = [0, 192], sizes = [1, 64], strides = [1, 1]} : vector<1x256xf32> to vector<1x64xf32>
    %141 = arith.negf %140 : vector<1x64xf32>
    %142 = math.exp %141 : vector<1x64xf32>
    %cst_30 = arith.constant 1.000000e+00 : f32
    %143 = vector.broadcast %cst_30 : f32 to vector<1x64xf32>
    %144 = arith.addf %143, %142 : vector<1x64xf32>
    %145 = arith.divf %143, %144 : vector<1x64xf32>
    %146 = vector.extract_strided_slice %137 {offsets = [0, 0], sizes = [1, 64], strides = [1, 1]} : vector<1x128xf32> to vector<1x64xf32>
    %147 = vector.extract_strided_slice %137 {offsets = [0, 64], sizes = [1, 64], strides = [1, 1]} : vector<1x128xf32> to vector<1x64xf32>
    %148 = arith.mulf %147, %123 : vector<1x64xf32>
    %149 = arith.mulf %146, %139 : vector<1x64xf32>
    %150 = arith.addf %148, %149 : vector<1x64xf32>
    %151 = math.tanh %150 : vector<1x64xf32>
    %152 = arith.mulf %145, %151 : vector<1x64xf32>
    %153 = vector.extract_strided_slice %152 {offsets = [0, 32], sizes = [1, 32], strides = [1, 1]} : vector<1x64xf32> to vector<1x32xf32>
    %c3 = arith.constant 3 : index
    %c0_31 = arith.constant 0 : index
    %154 = vector.load %arg8[%c3, %c0_31] : memref<8x32xf32, #tpu.memory_space<vmem>>, vector<1x32xf32>
    tpu.vector_store %arg8[%c3, %c0_31], %153 {strides = array<i32>} : memref<8x32xf32, #tpu.memory_space<vmem>>, vector<1x32xf32>,
    %155 = arith.truncf %152 : vector<1x64xf32> to vector<1x64xbf16>
    %cst_32 = arith.constant dense<0.000000e+00> : vector<1x256xf32>
    %156 = tpu.matmul %155, %16, %cst_32 {dimension_numbers = #tpu.dot_dimension_numbers<[1], [0], [0], [1], [0, 0, 1, 1], [], []>} : vector<1x64xbf16>, vector<64x256xbf16>, vector<1x256xf32> -> vector<1x256xf32>
    %157 = vector.extract_strided_slice %15 {offsets = [5, 0], sizes = [1, 256], strides = [1, 1]} : vector<8x256xf32> to vector<1x256xf32>
    %158 = arith.addf %157, %156 : vector<1x256xf32>
    %159 = vector.extract_strided_slice %158 {offsets = [0, 0], sizes = [1, 128], strides = [1, 1]} : vector<1x256xf32> to vector<1x128xf32>
    %160 = arith.negf %159 : vector<1x128xf32>
    %161 = math.exp %160 : vector<1x128xf32>
    %cst_33 = arith.constant 1.000000e+00 : f32
    %162 = vector.broadcast %cst_33 : f32 to vector<1x128xf32>
    %163 = arith.addf %162, %161 : vector<1x128xf32>
    %164 = arith.divf %162, %163 : vector<1x128xf32>
    %165 = vector.extract_strided_slice %158 {offsets = [0, 128], sizes = [1, 64], strides = [1, 1]} : vector<1x256xf32> to vector<1x64xf32>
    %166 = math.tanh %165 : vector<1x64xf32>
    %167 = vector.extract_strided_slice %158 {offsets = [0, 192], sizes = [1, 64], strides = [1, 1]} : vector<1x256xf32> to vector<1x64xf32>
    %168 = arith.negf %167 : vector<1x64xf32>
    %169 = math.exp %168 : vector<1x64xf32>
    %cst_34 = arith.constant 1.000000e+00 : f32
    %170 = vector.broadcast %cst_34 : f32 to vector<1x64xf32>
    %171 = arith.addf %170, %169 : vector<1x64xf32>
    %172 = arith.divf %170, %171 : vector<1x64xf32>
    %173 = vector.extract_strided_slice %164 {offsets = [0, 0], sizes = [1, 64], strides = [1, 1]} : vector<1x128xf32> to vector<1x64xf32>
    %174 = vector.extract_strided_slice %164 {offsets = [0, 64], sizes = [1, 64], strides = [1, 1]} : vector<1x128xf32> to vector<1x64xf32>
    %175 = arith.mulf %174, %150 : vector<1x64xf32>
    %176 = arith.mulf %173, %166 : vector<1x64xf32>
    %177 = arith.addf %175, %176 : vector<1x64xf32>
    %178 = math.tanh %177 : vector<1x64xf32>
    %179 = arith.mulf %172, %178 : vector<1x64xf32>
    %180 = vector.extract_strided_slice %179 {offsets = [0, 32], sizes = [1, 32], strides = [1, 1]} : vector<1x64xf32> to vector<1x32xf32>
    %c4 = arith.constant 4 : index
    %c0_35 = arith.constant 0 : index
    %181 = vector.load %arg8[%c4, %c0_35] : memref<8x32xf32, #tpu.memory_space<vmem>>, vector<1x32xf32>
    tpu.vector_store %arg8[%c4, %c0_35], %180 {strides = array<i32>} : memref<8x32xf32, #tpu.memory_space<vmem>>, vector<1x32xf32>,
    %182 = arith.truncf %179 : vector<1x64xf32> to vector<1x64xbf16>
    %cst_36 = arith.constant dense<0.000000e+00> : vector<1x256xf32>
    %183 = tpu.matmul %182, %16, %cst_36 {dimension_numbers = #tpu.dot_dimension_numbers<[1], [0], [0], [1], [0, 0, 1, 1], [], []>} : vector<1x64xbf16>, vector<64x256xbf16>, vector<1x256xf32> -> vector<1x256xf32>
    %184 = vector.extract_strided_slice %15 {offsets = [6, 0], sizes = [1, 256], strides = [1, 1]} : vector<8x256xf32> to vector<1x256xf32>
    %185 = arith.addf %184, %183 : vector<1x256xf32>
    %186 = vector.extract_strided_slice %185 {offsets = [0, 0], sizes = [1, 128], strides = [1, 1]} : vector<1x256xf32> to vector<1x128xf32>
    %187 = arith.negf %186 : vector<1x128xf32>
    %188 = math.exp %187 : vector<1x128xf32>
    %cst_37 = arith.constant 1.000000e+00 : f32
    %189 = vector.broadcast %cst_37 : f32 to vector<1x128xf32>
    %190 = arith.addf %189, %188 : vector<1x128xf32>
    %191 = arith.divf %189, %190 : vector<1x128xf32>
    %192 = vector.extract_strided_slice %185 {offsets = [0, 128], sizes = [1, 64], strides = [1, 1]} : vector<1x256xf32> to vector<1x64xf32>
    %193 = math.tanh %192 : vector<1x64xf32>
    %194 = vector.extract_strided_slice %185 {offsets = [0, 192], sizes = [1, 64], strides = [1, 1]} : vector<1x256xf32> to vector<1x64xf32>
    %195 = arith.negf %194 : vector<1x64xf32>
    %196 = math.exp %195 : vector<1x64xf32>
    %cst_38 = arith.constant 1.000000e+00 : f32
    %197 = vector.broadcast %cst_38 : f32 to vector<1x64xf32>
    %198 = arith.addf %197, %196 : vector<1x64xf32>
    %199 = arith.divf %197, %198 : vector<1x64xf32>
    %200 = vector.extract_strided_slice %191 {offsets = [0, 0], sizes = [1, 64], strides = [1, 1]} : vector<1x128xf32> to vector<1x64xf32>
    %201 = vector.extract_strided_slice %191 {offsets = [0, 64], sizes = [1, 64], strides = [1, 1]} : vector<1x128xf32> to vector<1x64xf32>
    %202 = arith.mulf %201, %177 : vector<1x64xf32>
    %203 = arith.mulf %200, %193 : vector<1x64xf32>
    %204 = arith.addf %202, %203 : vector<1x64xf32>
    %205 = math.tanh %204 : vector<1x64xf32>
    %206 = arith.mulf %199, %205 : vector<1x64xf32>
    %207 = vector.extract_strided_slice %206 {offsets = [0, 32], sizes = [1, 32], strides = [1, 1]} : vector<1x64xf32> to vector<1x32xf32>
    %c5 = arith.constant 5 : index
    %c0_39 = arith.constant 0 : index
    %208 = vector.load %arg8[%c5, %c0_39] : memref<8x32xf32, #tpu.memory_space<vmem>>, vector<1x32xf32>
    tpu.vector_store %arg8[%c5, %c0_39], %207 {strides = array<i32>} : memref<8x32xf32, #tpu.memory_space<vmem>>, vector<1x32xf32>,
    %209 = arith.truncf %206 : vector<1x64xf32> to vector<1x64xbf16>
    %cst_40 = arith.constant dense<0.000000e+00> : vector<1x256xf32>
    %210 = tpu.matmul %209, %16, %cst_40 {dimension_numbers = #tpu.dot_dimension_numbers<[1], [0], [0], [1], [0, 0, 1, 1], [], []>} : vector<1x64xbf16>, vector<64x256xbf16>, vector<1x256xf32> -> vector<1x256xf32>
    %211 = vector.extract_strided_slice %15 {offsets = [7, 0], sizes = [1, 256], strides = [1, 1]} : vector<8x256xf32> to vector<1x256xf32>
    %212 = arith.addf %211, %210 : vector<1x256xf32>
    %213 = vector.extract_strided_slice %212 {offsets = [0, 0], sizes = [1, 128], strides = [1, 1]} : vector<1x256xf32> to vector<1x128xf32>
    %214 = arith.negf %213 : vector<1x128xf32>
    %215 = math.exp %214 : vector<1x128xf32>
    %cst_41 = arith.constant 1.000000e+00 : f32
    %216 = vector.broadcast %cst_41 : f32 to vector<1x128xf32>
    %217 = arith.addf %216, %215 : vector<1x128xf32>
    %218 = arith.divf %216, %217 : vector<1x128xf32>
    %219 = vector.extract_strided_slice %212 {offsets = [0, 128], sizes = [1, 64], strides = [1, 1]} : vector<1x256xf32> to vector<1x64xf32>
    %220 = math.tanh %219 : vector<1x64xf32>
    %221 = vector.extract_strided_slice %212 {offsets = [0, 192], sizes = [1, 64], strides = [1, 1]} : vector<1x256xf32> to vector<1x64xf32>
    %222 = arith.negf %221 : vector<1x64xf32>
    %223 = math.exp %222 : vector<1x64xf32>
    %cst_42 = arith.constant 1.000000e+00 : f32
    %224 = vector.broadcast %cst_42 : f32 to vector<1x64xf32>
    %225 = arith.addf %224, %223 : vector<1x64xf32>
    %226 = arith.divf %224, %225 : vector<1x64xf32>
    %227 = vector.extract_strided_slice %218 {offsets = [0, 0], sizes = [1, 64], strides = [1, 1]} : vector<1x128xf32> to vector<1x64xf32>
    %228 = vector.extract_strided_slice %218 {offsets = [0, 64], sizes = [1, 64], strides = [1, 1]} : vector<1x128xf32> to vector<1x64xf32>
    %229 = arith.mulf %228, %204 : vector<1x64xf32>
    %230 = arith.mulf %227, %220 : vector<1x64xf32>
    %231 = arith.addf %229, %230 : vector<1x64xf32>
    %232 = math.tanh %231 : vector<1x64xf32>
    %233 = arith.mulf %226, %232 : vector<1x64xf32>
    %234 = vector.extract_strided_slice %233 {offsets = [0, 32], sizes = [1, 32], strides = [1, 1]} : vector<1x64xf32> to vector<1x32xf32>
    %c6 = arith.constant 6 : index
    %c0_43 = arith.constant 0 : index
    %235 = vector.load %arg8[%c6, %c0_43] : memref<8x32xf32, #tpu.memory_space<vmem>>, vector<1x32xf32>
    tpu.vector_store %arg8[%c6, %c0_43], %234 {strides = array<i32>} : memref<8x32xf32, #tpu.memory_space<vmem>>, vector<1x32xf32>,
    %236 = arith.truncf %233 : vector<1x64xf32> to vector<1x64xbf16>
    %cst_44 = arith.constant dense<0.000000e+00> : vector<1x256xf32>
    %237 = tpu.matmul %236, %16, %cst_44 {dimension_numbers = #tpu.dot_dimension_numbers<[1], [0], [0], [1], [0, 0, 1, 1], [], []>} : vector<1x64xbf16>, vector<64x256xbf16>, vector<1x256xf32> -> vector<1x256xf32>
    %238 = vector.extract_strided_slice %15 {offsets = [7, 0], sizes = [1, 256], strides = [1, 1]} : vector<8x256xf32> to vector<1x256xf32>
    %239 = arith.addf %238, %237 : vector<1x256xf32>
    %240 = vector.extract_strided_slice %239 {offsets = [0, 0], sizes = [1, 128], strides = [1, 1]} : vector<1x256xf32> to vector<1x128xf32>
    %241 = arith.negf %240 : vector<1x128xf32>
    %242 = math.exp %241 : vector<1x128xf32>
    %cst_45 = arith.constant 1.000000e+00 : f32
    %243 = vector.broadcast %cst_45 : f32 to vector<1x128xf32>
    %244 = arith.addf %243, %242 : vector<1x128xf32>
    %245 = arith.divf %243, %244 : vector<1x128xf32>
    %246 = vector.extract_strided_slice %239 {offsets = [0, 128], sizes = [1, 64], strides = [1, 1]} : vector<1x256xf32> to vector<1x64xf32>
    %247 = math.tanh %246 : vector<1x64xf32>
    %248 = vector.extract_strided_slice %239 {offsets = [0, 192], sizes = [1, 64], strides = [1, 1]} : vector<1x256xf32> to vector<1x64xf32>
    %249 = arith.negf %248 : vector<1x64xf32>
    %250 = math.exp %249 : vector<1x64xf32>
    %cst_46 = arith.constant 1.000000e+00 : f32
    %251 = vector.broadcast %cst_46 : f32 to vector<1x64xf32>
    %252 = arith.addf %251, %250 : vector<1x64xf32>
    %253 = arith.divf %251, %252 : vector<1x64xf32>
    %254 = vector.extract_strided_slice %245 {offsets = [0, 0], sizes = [1, 64], strides = [1, 1]} : vector<1x128xf32> to vector<1x64xf32>
    %255 = vector.extract_strided_slice %245 {offsets = [0, 64], sizes = [1, 64], strides = [1, 1]} : vector<1x128xf32> to vector<1x64xf32>
    %256 = arith.mulf %255, %231 : vector<1x64xf32>
    %257 = arith.mulf %254, %247 : vector<1x64xf32>
    %258 = arith.addf %256, %257 : vector<1x64xf32>
    %259 = math.tanh %258 : vector<1x64xf32>
    %260 = arith.mulf %253, %259 : vector<1x64xf32>
    %261 = vector.extract_strided_slice %260 {offsets = [0, 32], sizes = [1, 32], strides = [1, 1]} : vector<1x64xf32> to vector<1x32xf32>
    %c7 = arith.constant 7 : index
    %c0_47 = arith.constant 0 : index
    %262 = vector.load %arg8[%c7, %c0_47] : memref<8x32xf32, #tpu.memory_space<vmem>>, vector<1x32xf32>
    tpu.vector_store %arg8[%c7, %c0_47], %261 {strides = array<i32>} : memref<8x32xf32, #tpu.memory_space<vmem>>, vector<1x32xf32>,
    %c0_48 = arith.constant 0 : index
    %c0_49 = arith.constant 0 : index
    %263 = vector.load %arg8[%c0_48, %c0_49] : memref<8x32xf32, #tpu.memory_space<vmem>>, vector<8x32xf32>
    %264 = arith.truncf %263 : vector<8x32xf32> to vector<8x32xbf16>
    %c0_50 = arith.constant 0 : index
    %c0_51 = arith.constant 0 : index
    %265 = vector.load %arg5[%c0_50, %c0_51] : memref<32x128xbf16, #tpu.memory_space<vmem>>, vector<32x128xbf16>
    %cst_52 = arith.constant dense<0.000000e+00> : vector<8x128xf32>
    %266 = tpu.matmul %264, %265, %cst_52 {dimension_numbers = #tpu.dot_dimension_numbers<[1], [0], [0], [1], [0, 0, 1, 1], [], []>} : vector<8x32xbf16>, vector<32x128xbf16>, vector<8x128xf32> -> vector<8x128xf32>
    %c0_53 = arith.constant 0 : index
    %c0_54 = arith.constant 0 : index
    %267 = vector.load %arg6[%c0_53, %c0_54] : memref<1x128xf32, #tpu.memory_space<vmem>>, vector<1x128xf32>
    %268 = vector.broadcast %267 : vector<1x128xf32> to vector<8x128xf32>
    %269 = arith.addf %266, %268 : vector<8x128xf32>
    %cst_55 = arith.constant 0.000000e+00 : f32
    %270 = vector.broadcast %cst_55 : f32 to vector<8x128xf32>
    %271 = arith.maximumf %269, %270 : vector<8x128xf32>
    %272 = tpu.iota {dimensions = array<i32: 1>} : vector<8x128xi32>
    %c64_i32 = arith.constant 64 : i32
    %273 = vector.broadcast %c64_i32 : i32 to vector<8x128xi32>
    %274 = arith.cmpi slt, %272, %273 : vector<8x128xi32>
    %cst_56 = arith.constant -1.000000e+30 : f32
    %275 = vector.broadcast %cst_56 : f32 to vector<8x128xf32>
    %276 = arith.select %274, %271, %275 : vector<8x128xi1>, vector<8x128xf32>
    %cst_57 = arith.constant dense<0xFF800000> : vector<8xf32>
    %277 = vector.multi_reduction <maximumf>, %276, %cst_57 [1] : vector<8x128xf32> to vector<8xf32>
    %278 = vector.shape_cast %277 : vector<8xf32> to vector<8x1xf32>
    %279 = vector.broadcast %278 : vector<8x1xf32> to vector<8x128xf32>
    %280 = arith.subf %276, %279 : vector<8x128xf32>
    %281 = math.exp %280 : vector<8x128xf32>
    %cst_58 = arith.constant dense<0.000000e+00> : vector<8xf32>
    %282 = vector.multi_reduction <add>, %281, %cst_58 [1] : vector<8x128xf32> to vector<8xf32>
    %283 = vector.shape_cast %282 : vector<8xf32> to vector<8x1xf32>
    %284 = math.log %283 : vector<8x1xf32>
    %285 = vector.broadcast %284 : vector<8x1xf32> to vector<8x128xf32>
    %286 = arith.subf %280, %285 : vector<8x128xf32>
    %c0_59 = arith.constant 0 : index
    %c0_60 = arith.constant 0 : index
    %287 = vector.load %arg7[%c0_59, %c0_60] : memref<8x128xf32, #tpu.memory_space<vmem>>, vector<8x128xf32>
    tpu.vector_store %arg7[%c0_59, %c0_60], %286 {strides = array<i32>} : memref<8x128xf32, #tpu.memory_space<vmem>>, vector<8x128xf32>,
    return
  }
}

</mosaic_0001>

<llo_original>
// kernel: rnn_model_forward.1
$region0: #{rnn_model_forward.1}
  #allocation0 [shape = 'u32[]', space=smem, size = 0x4, offset = 0x4, fixed_abs, tag = 'smem constant byte address 0x4 - core index']
  #allocation1 [shape = 'u32[144,128]{1,0:T(1,128)}', space=vmem, size = 0x12000, scoped, tag = 'internal scratch']
  #allocation2 [shape = 'f32[8,32]{1,0:T(8,128)}', space=vmem, size = 0x1000, scoped, tag = 'scratch operand']
  %s0 = inlined_call_operand.vmem [shape: s32[8,1], index: 0, kind: input, shape index: {}]
  %s1 = inlined_call_operand.vmem [shape: bf16[64,32], index: 1, kind: input, shape index: {}]
  %s2 = inlined_call_operand.hbm [shape: bf16[32,256], index: 2, kind: input, shape index: {}]
  %s3 = inlined_call_operand.vmem [shape: f32[1,256], index: 3, kind: input, shape index: {}]
  %s4 = inlined_call_operand.vmem [shape: bf16[64,256], index: 4, kind: input, shape index: {}]
  %s5 = inlined_call_operand.vmem [shape: bf16[32,128], index: 5, kind: input, shape index: {}]
  %s6 = inlined_call_operand.vmem [shape: f32[1,128], index: 6, kind: input, shape index: {}]
  %s7 = inlined_call_operand.hbm [shape: f32[8,128], index: 7, kind: output, shape index: {}]
  %s8 = sld [smem:[#allocation0]]
  $region42: #{rnn_model_forward.1} parent=0
    _
  %s10 = ssub.s32 1, %s8
  %s11 = scalar_select 0, %s10, %s8
  $region1: #{rnn_model_forward.1} parent=0
    #allocation3 [shape = 'u8[16384]{0}', space=vmem, size = 0x4000, scoped, tag = 'input window, operand 2, single buffered']
    #allocation4 [shape = 's32[1]{0}', space=sflag, size = 0x4, scoped, tag = 'scoped memory for rnn_model_forward.1']
    #allocation5 [shape = 's32[1]{0}', space=sflag, size = 0x4, scoped, tag = 'scoped memory for rnn_model_forward.1']
    #allocation6 [shape = 'u8[4096]{0}', space=vmem, size = 0x1000, scoped, tag = 'output window, operand 0, single buffered']
    %12 = vsyncpa [#allocation4], 0
    %13 = vsyncpa [#allocation5], 0
    // Predicated region
    $region2: #{rnn_model_forward.1} parent=1 // pred_check
      _
    $region3: #{rnn_model_forward.1} parent=1 // pred_check_branch
      %15 = sbr.rel (0) target = $region5
    $region4: #{rnn_model_forward.1} parent=1 // pred_region
      _
    $region5: #{rnn_model_forward.1} parent=1 // pred_fallthru
      _
    // Predicated region
    $region6: #{rnn_model_forward.1} parent=1 // pred_check
      _
    $region7: #{rnn_model_forward.1} parent=1 // pred_check_branch
      %17 = sbr.rel (0) target = $region9
    $region8: #{rnn_model_forward.1} parent=1 // pred_region
      _
    $region9: #{rnn_model_forward.1} parent=1 // pred_fallthru
      _
    // Predicated region
    $region10: #{rnn_model_forward.1} parent=1 // pred_check
      _
    $region11: #{rnn_model_forward.1} parent=1 // pred_check_branch
      %19 = sbr.rel (0) target = $region13
    $region12: #{rnn_model_forward.1} parent=1 // pred_region
      %s21 = ssub.s32 512, 512
      %22 = vsyncadd [#allocation4], %s21
      %s23 = sshll.u32 [#allocation3], 4
      %s24 = int_to_ptr.vmem [resolvable:$true] %s23
      %29 = dma.hbm_to_vmem [thread:$0]  %s2, 512, %s24, [#allocation4], 128, 128, 8
    $region13: #{rnn_model_forward.1} parent=1 // pred_fallthru
      _
    // Predicated region
    $region14: #{rnn_model_forward.1} parent=1 // pred_check
      _
    $region15: #{rnn_model_forward.1} parent=1 // pred_check_branch
      %31 = sbr.rel (0) target = $region17
    $region16: #{rnn_model_forward.1} parent=1 // pred_region
      _
    $region17: #{rnn_model_forward.1} parent=1 // pred_fallthru
      _
    // Predicated region
    $region18: #{rnn_model_forward.1} parent=1 // pred_check
      _
    $region19: #{rnn_model_forward.1} parent=1 // pred_check_branch
      %33 = sbr.rel (0) target = $region21
    $region20: #{rnn_model_forward.1} parent=1 // pred_region
      _
    $region21: #{rnn_model_forward.1} parent=1 // pred_fallthru
      _
    // Predicated region
    $region22: #{rnn_model_forward.1} parent=1 // pred_check
      _
    $region23: #{rnn_model_forward.1} parent=1 // pred_check_branch
      %35 = sbr.rel (0) target = $region25
    $region24: #{rnn_model_forward.1} parent=1 // pred_region
      _
    $region25: #{rnn_model_forward.1} parent=1 // pred_fallthru
      _
    // Predicated region
    $region26: #{rnn_model_forward.1} parent=1 // pred_check
      _
    $region27: #{rnn_model_forward.1} parent=1 // pred_check_branch
      %37 = sbr.rel (0) target = $region29
    $region28: #{rnn_model_forward.1} parent=1 // pred_region
      _
    $region29: #{rnn_model_forward.1} parent=1 // pred_fallthru
      _
    // Predicated region
    $region30: #{rnn_model_forward.1} parent=1 // pred_check
      _
    $region31: #{rnn_model_forward.1} parent=1 // pred_check_branch
      %39 = sbr.rel (0) target = $region33
    $region32: #{rnn_model_forward.1} parent=1 // pred_region
      %40 = dma.done [#allocation4], 512
    $region33: #{rnn_model_forward.1} parent=1 // pred_fallthru
      _
    %v42 = vld [vmem:[%s0] sm:$0xff]
    %v43 = vlaneseq
    %v44 = vand.u32 %v43, 127
    %45 = vset.pattern.permute.xlu0 0
    %46 = vperm.xlu0 %45, %v42
    %v47 = vpop.permute.xlu0 %46
    %vm48 = vcmp.eq.s32.totalorder %v44, %v47
    %v49 = vsel %vm48, 1.0, 0.0
    %v50 = vpack.c.bf16 %v49, %v49
    %v51 = vld [vmem:[%s1] sm:$0xf]
    %v52 = vld [vmem:[%s1 + $0x4] sm:$0xf]
    %v53 = vld [vmem:[%s1 + $0x8] sm:$0xf]
    %v54 = vld [vmem:[%s1 + $0xc] sm:$0xf]
    %v55 = vld [vmem:[%s1 + $0x10] sm:$0xf]
    %v56 = vld [vmem:[%s1 + $0x14] sm:$0xf]
    %v57 = vld [vmem:[%s1 + $0x18] sm:$0xf]
    %v58 = vld [vmem:[%s1 + $0x1c] sm:$0xf]
    %v67 = vunpack.c.l.b16 %v51
    %v68 = vunpack.c.l.b16 %v52
    %v69 = vunpack.c.l.b16 %v53
    %v70 = vunpack.c.l.b16 %v54
    %v71 = vunpack.c.l.b16 %v55
    %v72 = vunpack.c.l.b16 %v56
    %v73 = vunpack.c.l.b16 %v57
    %v74 = vunpack.c.l.b16 %v58
    %v75 = vpack.c.b16 %v68, %v67
    %v76 = vpack.c.b16 %v70, %v69
    %v77 = vpack.c.b16 %v72, %v71
    %v78 = vpack.c.b16 %v74, %v73
    %vm83 = vcmask 523264
    %v85 = vsel %vm83, %v50, 0
    %87 = vmatprep.subr.bf16.mxu0 0
    %88 = vmatpush1.bf16.msra.mxu0 %v75
    %89 = vmatprep.subr.bf16.mxu0 0
    %90 = vmatpush1.bf16.msra.mxu0 %v76
    %91 = vmatprep.subr.bf16.mxu0 0
    %92 = vmatpush1.bf16.msra.mxu0 %v77
    %93 = vmatprep.subr.bf16.mxu0 0
    %94 = vmatpush1.bf16.msra.mxu0 %v78
    %95 = vmatprep.subr.bf16.mxu0 0
    %96 = vmatpush1.bf16.msra.mxu0 0
    %97 = vmatprep.subr.bf16.mxu0 0
    %98 = vmatpush1.bf16.msra.mxu0 0
    %99 = vmatprep.subr.bf16.mxu0 0
    %100 = vmatpush1.bf16.msra.mxu0 0
    %101 = vmatprep.subr.bf16.mxu0 0
    %102 = vmatpush1.bf16.msra.mxu0 0
    %103 = vmatprep.subr.bf16.mxu0 0
    %104 = vmatpush1.bf16.msra.mxu0 0
    %105 = vmatprep.subr.bf16.mxu0 0
    %106 = vmatpush1.bf16.msra.mxu0 0
    %107 = vmatprep.subr.bf16.mxu0 0
    %108 = vmatpush1.bf16.msra.mxu0 0
    %109 = vmatprep.subr.bf16.mxu0 0
    %110 = vmatpush1.bf16.msra.mxu0 0
    %111 = vmatprep.subr.bf16.mxu0 0
    %112 = vmatpush1.bf16.msra.mxu0 0
    %113 = vmatprep.subr.bf16.mxu0 0
    %114 = vmatpush1.bf16.msra.mxu0 0
    %115 = vmatprep.subr.bf16.mxu0 0
    %116 = vmatpush1.bf16.msra.mxu0 0
    %117 = vmatprep.subr.bf16.mxu0 0
    %118 = vmatpush1.bf16.msra.mxu0 0
    %119 = vmatprep.mubr.bf16.mxu0 0
    %120 = vmatmul.mubr.bf16.gmra.mrb[0].mxu0 %v85
    %v121 = vpop.f32.mrb[0].mxu0
    %v122 = vadd.f32 0.0, %v121
    %v123 = vpop.f32.mrb[0].mxu0
    %v124 = vpop.f32.mrb[0].mxu0
    %v125 = vpop.f32.mrb[0].mxu0
    %126 = vdwg.mxu0
    %v127 = vpack.c.bf16 %v122, %v122
    %v128 = vld [vmem:[#allocation3] sm:$0xff]
    %v129 = vld [vmem:[#allocation3 + $0x8] sm:$0xff]
    %v130 = vld [vmem:[#allocation3 + $0x10] sm:$0xff]
    %v131 = vld [vmem:[#allocation3 + $0x18] sm:$0xff]
    %v132 = vld [vmem:[%s3] sm:$0x3]
    %v134 = vlaneseq
    %v135 = vshrl.u32 %v134, 7
    %v136 = vsub.s32 0, %v135
    %v137 = vrot.slane %v132, %v136
    %v138 = vlaneseq
    %v139 = vshrl.u32 %v138, 7
    %v140 = vsub.s32 1, %v139
    %v141 = vrot.slane %v132, %v140
    %v148 = vunpack.c.l.b16 %v128
    %v149 = vunpack.c.h.b16 %v128
    %v150 = vunpack.c.l.b16 %v129
    %v151 = vunpack.c.h.b16 %v129
    %v152 = vunpack.c.l.b16 %v130
    %v153 = vunpack.c.h.b16 %v130
    %v154 = vunpack.c.l.b16 %v131
    %v155 = vunpack.c.h.b16 %v131
    %v156 = vpack.c.b16 %v150, %v148
    %v157 = vpack.c.b16 %v151, %v149
    %v158 = vpack.c.b16 %v154, %v152
    %v159 = vpack.c.b16 %v155, %v153
    %vm164 = vcmask 261120
    %v166 = vsel %vm164, %v127, 0
    %168 = vmatprep.subr.bf16.mxu0 %v157
    %169 = vmatpush1.bf16.msra.mxu0 %v156
    %170 = vmatprep.subr.bf16.mxu0 %v159
    %171 = vmatpush1.bf16.msra.mxu0 %v158
    %172 = vmatprep.subr.bf16.mxu0 0
    %173 = vmatpush1.bf16.msra.mxu0 0
    %174 = vmatprep.subr.bf16.mxu0 0
    %175 = vmatpush1.bf16.msra.mxu0 0
    %176 = vmatprep.subr.bf16.mxu0 0
    %177 = vmatpush1.bf16.msra.mxu0 0
    %178 = vmatprep.subr.bf16.mxu0 0
    %179 = vmatpush1.bf16.msra.mxu0 0
    %180 = vmatprep.subr.bf16.mxu0 0
    %181 = vmatpush1.bf16.msra.mxu0 0
    %182 = vmatprep.subr.bf16.mxu0 0
    %183 = vmatpush1.bf16.msra.mxu0 0
    %184 = vmatprep.subr.bf16.mxu0 0
    %185 = vmatpush1.bf16.msra.mxu0 0
    %186 = vmatprep.subr.bf16.mxu0 0
    %187 = vmatpush1.bf16.msra.mxu0 0
    %188 = vmatprep.subr.bf16.mxu0 0
    %189 = vmatpush1.bf16.msra.mxu0 0
    %190 = vmatprep.subr.bf16.mxu0 0
    %191 = vmatpush1.bf16.msra.mxu0 0
    %192 = vmatprep.subr.bf16.mxu0 0
    %193 = vmatpush1.bf16.msra.mxu0 0
    %194 = vmatprep.subr.bf16.mxu0 0
    %195 = vmatpush1.bf16.msra.mxu0 0
    %196 = vmatprep.subr.bf16.mxu0 0
    %197 = vmatpush1.bf16.msra.mxu0 0
    %198 = vmatprep.subr.bf16.mxu0 0
    %199 = vmatpush1.bf16.msra.mxu0 0
    %200 = vmatprep.mubr.bf16.mxu0 0
    %201 = vmatmul.mubr.bf16.gmra.mrb[0].mxu0 %v166
    %v202 = vpop.f32.mrb[0].mxu0
    %v203 = vadd.f32 %v137, %v202
    %v204 = vpop.f32.mrb[0].mxu0
    %v205 = vadd.f32 %v141, %v204
    %v206 = vpop.f32.mrb[0].mxu0
    %v207 = vpop.f32.mrb[0].mxu0
    %208 = vdwg.mxu0
    %v209 = vld [vmem:[%s4] sm:$0xff]
    %v210 = vld [vmem:[%s4 + $0x8] sm:$0xff]
    %v211 = vld [vmem:[%s4 + $0x10] sm:$0xff]
    %v212 = vld [vmem:[%s4 + $0x18] sm:$0xff]
    %v213 = vld [vmem:[%s4 + $0x20] sm:$0xff]
    %v214 = vld [vmem:[%s4 + $0x28] sm:$0xff]
    %v215 = vld [vmem:[%s4 + $0x30] sm:$0xff]
    %v216 = vld [vmem:[%s4 + $0x38] sm:$0xff]
    %vm217 = vcmp.lt.s32.totalorder %v44, 32
    %v218 = vsel %vm217, 1, 0
    %v219 = vcvt.s32.f32 %v218
    %v220 = vxor.u32 %v203, 2147483648
    %v221 = vmul.f32 %v220, 1.442695
    %v222 = vpow.pop %v221
    %v223 = vadd.f32 %v222, 1.0
    %v224 = vrcp.pop %v223
    %v225 = vmul.f32 1.0, %v224
    %v226 = vtanh.pop %v205
    %v227 = vxor.u32 %v205, 2147483648
    %v228 = vmul.f32 %v227, 1.442695
    %v229 = vpow.pop %v228
    %v230 = vadd.f32 %v229, 1.0
    %v231 = vrcp.pop %v230
    %v232 = vmul.f32 1.0, %v231
    %v233 = vmul.f32 %v225, 0.0
    %v234 = vmul.f32 %v225, %v226
    %236 = vrot.lane.b32.xlu0 %v234, 64
    %v237 = vpop.permute.xlu0 %236
    %v239 = vadd.f32 %v233, %v237
    %v240 = vtanh.pop %v239
    %v241 = vmul.f32 %v232, %v240
    %243 = vrot.lane.b32.xlu0 %v219, 64
    %v244 = vpop.permute.xlu0 %243
    %v246 = vmul.f32 %v241, %v244
    %v247 = vmul.f32 %v239, %v244
    %v248 = vpack.c.bf16 %v246, %v246
    %250 = vrot.lane.b32.xlu0 %v248, 64
    %v251 = vpop.permute.xlu0 %250
    %v260 = vunpack.c.l.b16 %v209
    %v261 = vunpack.c.h.b16 %v209
    %v262 = vunpack.c.l.b16 %v210
    %v263 = vunpack.c.h.b16 %v210
    %v264 = vunpack.c.l.b16 %v211
    %v265 = vunpack.c.h.b16 %v211
    %v266 = vunpack.c.l.b16 %v212
    %v267 = vunpack.c.h.b16 %v212
    %v268 = vunpack.c.l.b16 %v213
    %v269 = vunpack.c.h.b16 %v213
    %v270 = vunpack.c.l.b16 %v214
    %v271 = vunpack.c.h.b16 %v214
    %v272 = vunpack.c.l.b16 %v215
    %v273 = vunpack.c.h.b16 %v215
    %v274 = vunpack.c.l.b16 %v216
    %v275 = vunpack.c.h.b16 %v216
    %v276 = vpack.c.b16 %v262, %v260
    %v277 = vpack.c.b16 %v263, %v261
    %v278 = vpack.c.b16 %v266, %v264
    %v279 = vpack.c.b16 %v267, %v265
    %v280 = vpack.c.b16 %v270, %v268
    %v281 = vpack.c.b16 %v271, %v269
    %v282 = vpack.c.b16 %v274, %v272
    %v283 = vpack.c.b16 %v275, %v273
    %v293 = vsel %vm83, %v251, 0
    %295 = vmatprep.subr.bf16.mxu0 %v277
    %296 = vmatpush1.bf16.msra.mxu0 %v276
    %297 = vmatprep.subr.bf16.mxu0 %v279
    %298 = vmatpush1.bf16.msra.mxu0 %v278
    %299 = vmatprep.subr.bf16.mxu0 %v281
    %300 = vmatpush1.bf16.msra.mxu0 %v280
    %301 = vmatprep.subr.bf16.mxu0 %v283
    %302 = vmatpush1.bf16.msra.mxu0 %v282
    %303 = vmatprep.subr.bf16.mxu0 0
    %304 = vmatpush1.bf16.msra.mxu0 0
    %305 = vmatprep.subr.bf16.mxu0 0
    %306 = vmatpush1.bf16.msra.mxu0 0
    %307 = vmatprep.subr.bf16.mxu0 0
    %308 = vmatpush1.bf16.msra.mxu0 0
    %309 = vmatprep.subr.bf16.mxu0 0
    %310 = vmatpush1.bf16.msra.mxu0 0
    %311 = vmatprep.subr.bf16.mxu0 0
    %312 = vmatpush1.bf16.msra.mxu0 0
    %313 = vmatprep.subr.bf16.mxu0 0
    %314 = vmatpush1.bf16.msra.mxu0 0
    %315 = vmatprep.subr.bf16.mxu0 0
    %316 = vmatpush1.bf16.msra.mxu0 0
    %317 = vmatprep.subr.bf16.mxu0 0
    %318 = vmatpush1.bf16.msra.mxu0 0
    %319 = vmatprep.subr.bf16.mxu0 0
    %320 = vmatpush1.bf16.msra.mxu0 0
    %321 = vmatprep.subr.bf16.mxu0 0
    %322 = vmatpush1.bf16.msra.mxu0 0
    %323 = vmatprep.subr.bf16.mxu0 0
    %324 = vmatpush1.bf16.msra.mxu0 0
    %325 = vmatprep.subr.bf16.mxu0 0
    %326 = vmatpush1.bf16.msra.mxu0 0
    %327 = vmatprep.mubr.bf16.mxu0 0
    %328 = vmatmul.mubr.bf16.gmra.mrb[0].mxu0 %v293
    %v329 = vpop.f32.mrb[0].mxu0
    %v330 = vadd.f32 0.0, %v329
    %v331 = vpop.f32.mrb[0].mxu0
    %v332 = vadd.f32 0.0, %v331
    %v333 = vpop.f32.mrb[0].mxu0
    %v334 = vpop.f32.mrb[0].mxu0
    %335 = vdwg.mxu0
    %v338 = vrot.slane %v330, 7
    %v339 = vrot.slane %v332, 7
    %v342 = vadd.f32 %v203, %v338
    %v343 = vadd.f32 %v205, %v339
    %v344 = vxor.u32 %v342, 2147483648
    %v345 = vmul.f32 %v344, 1.442695
    %v346 = vpow.pop %v345
    %v347 = vadd.f32 %v346, 1.0
    %v348 = vrcp.pop %v347
    %v349 = vmul.f32 1.0, %v348
    %v350 = vtanh.pop %v343
    %v351 = vxor.u32 %v343, 2147483648
    %v352 = vmul.f32 %v351, 1.442695
    %v353 = vpow.pop %v352
    %v354 = vadd.f32 %v353, 1.0
    %v355 = vrcp.pop %v354
    %v356 = vmul.f32 1.0, %v355
    %v358 = vrot.slane %v247, 7
    %v360 = vmul.f32 %v349, %v358
    %v361 = vmul.f32 %v349, %v350
    %363 = vrot.lane.b32.xlu0 %v361, 64
    %v364 = vpop.permute.xlu0 %363
    %v366 = vadd.f32 %v360, %v364
    %v367 = vtanh.pop %v366
    %v368 = vmul.f32 %v356, %v367
    %370 = vrot.lane.b32.xlu0 %v368, 32
    %v371 = vpop.permute.xlu0 %370
    %vm373 = vcmask 254977
    %374 = vst.msk [vmem:[#allocation2 - $0x1] sm:$0x2] %vm373, %v371
    %v375 = vpack.c.bf16 %v368, %v368
    %v377 = vshrl.u32 %v375, 16
    %379 = vrot.lane.b32.xlu0 %v377, 64
    %v380 = vpop.permute.xlu0 %379
    %v382 = vsel %vm83, %v380, 0
    %384 = vmatprep.subr.bf16.mxu0 %v277
    %385 = vmatpush1.bf16.msra.mxu0 %v276
    %386 = vmatprep.subr.bf16.mxu0 %v279
    %387 = vmatpush1.bf16.msra.mxu0 %v278
    %388 = vmatprep.subr.bf16.mxu0 %v281
    %389 = vmatpush1.bf16.msra.mxu0 %v280
    %390 = vmatprep.subr.bf16.mxu0 %v283
    %391 = vmatpush1.bf16.msra.mxu0 %v282
    %392 = vmatprep.subr.bf16.mxu0 0
    %393 = vmatpush1.bf16.msra.mxu0 0
    %394 = vmatprep.subr.bf16.mxu0 0
    %395 = vmatpush1.bf16.msra.mxu0 0
    %396 = vmatprep.subr.bf16.mxu0 0
    %397 = vmatpush1.bf16.msra.mxu0 0
    %398 = vmatprep.subr.bf16.mxu0 0
    %399 = vmatpush1.bf16.msra.mxu0 0
    %400 = vmatprep.subr.bf16.mxu0 0
    %401 = vmatpush1.bf16.msra.mxu0 0
    %402 = vmatprep.subr.bf16.mxu0 0
    %403 = vmatpush1.bf16.msra.mxu0 0
    %404 = vmatprep.subr.bf16.mxu0 0
    %405 = vmatpush1.bf16.msra.mxu0 0
    %406 = vmatprep.subr.bf16.mxu0 0
    %407 = vmatpush1.bf16.msra.mxu0 0
    %408 = vmatprep.subr.bf16.mxu0 0
    %409 = vmatpush1.bf16.msra.mxu0 0
    %410 = vmatprep.subr.bf16.mxu0 0
    %411 = vmatpush1.bf16.msra.mxu0 0
    %412 = vmatprep.subr.bf16.mxu0 0
    %413 = vmatpush1.bf16.msra.mxu0 0
    %414 = vmatprep.subr.bf16.mxu0 0
    %415 = vmatpush1.bf16.msra.mxu0 0
    %416 = vmatprep.mubr.bf16.mxu0 0
    %417 = vmatmul.mubr.bf16.gmra.mrb[0].mxu0 %v382
    %v418 = vpop.f32.mrb[0].mxu0
    %v419 = vadd.f32 0.0, %v418
    %v420 = vpop.f32.mrb[0].mxu0
    %v421 = vadd.f32 0.0, %v420
    %v422 = vpop.f32.mrb[0].mxu0
    %v423 = vpop.f32.mrb[0].mxu0
    %424 = vdwg.mxu0
    %v427 = vrot.slane %v419, 6
    %v428 = vrot.slane %v421, 6
    %v431 = vadd.f32 %v203, %v427
    %v432 = vadd.f32 %v205, %v428
    %v433 = vxor.u32 %v431, 2147483648
    %v434 = vmul.f32 %v433, 1.442695
    %v435 = vpow.pop %v434
    %v436 = vadd.f32 %v435, 1.0
    %v437 = vrcp.pop %v436
    %v438 = vmul.f32 1.0, %v437
    %v439 = vtanh.pop %v432
    %v440 = vxor.u32 %v432, 2147483648
    %v441 = vmul.f32 %v440, 1.442695
    %v442 = vpow.pop %v441
    %v443 = vadd.f32 %v442, 1.0
    %v444 = vrcp.pop %v443
    %v445 = vmul.f32 1.0, %v444
    %v447 = vrot.slane %v366, 7
    %v449 = vmul.f32 %v438, %v447
    %v450 = vmul.f32 %v438, %v439
    %452 = vrot.lane.b32.xlu0 %v450, 64
    %v453 = vpop.permute.xlu0 %452
    %v455 = vadd.f32 %v449, %v453
    %v456 = vtanh.pop %v455
    %v457 = vmul.f32 %v445, %v456
    %459 = vrot.lane.b32.xlu0 %v457, 32
    %v460 = vpop.permute.xlu0 %459
    %vm462 = vcmask 256002
    %463 = vst.msk [vmem:[#allocation2 - $0x1] sm:$0x4] %vm462, %v460
    %v464 = vpack.c.bf16 %v457, %v457
    %v466 = vrot.slane %v464, 1
    %467 = vrot.lane.b32.xlu0 %v466, 64
    %v468 = vpop.permute.xlu0 %467
    %v470 = vsel %vm83, %v468, 0
    %472 = vmatprep.subr.bf16.mxu0 %v277
    %473 = vmatpush1.bf16.msra.mxu0 %v276
    %474 = vmatprep.subr.bf16.mxu0 %v279
    %475 = vmatpush1.bf16.msra.mxu0 %v278
    %476 = vmatprep.subr.bf16.mxu0 %v281
    %477 = vmatpush1.bf16.msra.mxu0 %v280
    %478 = vmatprep.subr.bf16.mxu0 %v283
    %479 = vmatpush1.bf16.msra.mxu0 %v282
    %480 = vmatprep.subr.bf16.mxu0 0
    %481 = vmatpush1.bf16.msra.mxu0 0
    %482 = vmatprep.subr.bf16.mxu0 0
    %483 = vmatpush1.bf16.msra.mxu0 0
    %484 = vmatprep.subr.bf16.mxu0 0
    %485 = vmatpush1.bf16.msra.mxu0 0
    %486 = vmatprep.subr.bf16.mxu0 0
    %487 = vmatpush1.bf16.msra.mxu0 0
    %488 = vmatprep.subr.bf16.mxu0 0
    %489 = vmatpush1.bf16.msra.mxu0 0
    %490 = vmatprep.subr.bf16.mxu0 0
    %491 = vmatpush1.bf16.msra.mxu0 0
    %492 = vmatprep.subr.bf16.mxu0 0
    %493 = vmatpush1.bf16.msra.mxu0 0
    %494 = vmatprep.subr.bf16.mxu0 0
    %495 = vmatpush1.bf16.msra.mxu0 0
    %496 = vmatprep.subr.bf16.mxu0 0
    %497 = vmatpush1.bf16.msra.mxu0 0
    %498 = vmatprep.subr.bf16.mxu0 0
    %499 = vmatpush1.bf16.msra.mxu0 0
    %500 = vmatprep.subr.bf16.mxu0 0
    %501 = vmatpush1.bf16.msra.mxu0 0
    %502 = vmatprep.subr.bf16.mxu0 0
    %503 = vmatpush1.bf16.msra.mxu0 0
    %504 = vmatprep.mubr.bf16.mxu0 0
    %505 = vmatmul.mubr.bf16.gmra.mrb[0].mxu0 %v470
    %v506 = vpop.f32.mrb[0].mxu0
    %v507 = vadd.f32 0.0, %v506
    %v508 = vpop.f32.mrb[0].mxu0
    %v509 = vadd.f32 0.0, %v508
    %v510 = vpop.f32.mrb[0].mxu0
    %v511 = vpop.f32.mrb[0].mxu0
    %512 = vdwg.mxu0
    %v515 = vrot.slane %v507, 5
    %v516 = vrot.slane %v509, 5
    %v519 = vadd.f32 %v203, %v515
    %v520 = vadd.f32 %v205, %v516
    %v521 = vxor.u32 %v519, 2147483648
    %v522 = vmul.f32 %v521, 1.442695
    %v523 = vpow.pop %v522
    %v524 = vadd.f32 %v523, 1.0
    %v525 = vrcp.pop %v524
    %v526 = vmul.f32 1.0, %v525
    %v527 = vtanh.pop %v520
    %v528 = vxor.u32 %v520, 2147483648
    %v529 = vmul.f32 %v528, 1.442695
    %v530 = vpow.pop %v529
    %v531 = vadd.f32 %v530, 1.0
    %v532 = vrcp.pop %v531
    %v533 = vmul.f32 1.0, %v532
    %v535 = vrot.slane %v455, 7
    %v537 = vmul.f32 %v526, %v535
    %v538 = vmul.f32 %v526, %v527
    %540 = vrot.lane.b32.xlu0 %v538, 64
    %v541 = vpop.permute.xlu0 %540
    %v543 = vadd.f32 %v537, %v541
    %v544 = vtanh.pop %v543
    %v545 = vmul.f32 %v533, %v544
    %547 = vrot.lane.b32.xlu0 %v545, 32
    %v548 = vpop.permute.xlu0 %547
    %vm550 = vcmask 257027
    %551 = vst.msk [vmem:[#allocation2 - $0x1] sm:$0x8] %vm550, %v548
    %v552 = vpack.c.bf16 %v545, %v545
    %v554 = vshrl.u32 %v552, 16
    %v556 = vrot.slane %v554, 1
    %557 = vrot.lane.b32.xlu0 %v556, 64
    %v558 = vpop.permute.xlu0 %557
    %v560 = vsel %vm83, %v558, 0
    %562 = vmatprep.subr.bf16.mxu0 %v277
    %563 = vmatpush1.bf16.msra.mxu0 %v276
    %564 = vmatprep.subr.bf16.mxu0 %v279
    %565 = vmatpush1.bf16.msra.mxu0 %v278
    %566 = vmatprep.subr.bf16.mxu0 %v281
    %567 = vmatpush1.bf16.msra.mxu0 %v280
    %568 = vmatprep.subr.bf16.mxu0 %v283
    %569 = vmatpush1.bf16.msra.mxu0 %v282
    %570 = vmatprep.subr.bf16.mxu0 0
    %571 = vmatpush1.bf16.msra.mxu0 0
    %572 = vmatprep.subr.bf16.mxu0 0
    %573 = vmatpush1.bf16.msra.mxu0 0
    %574 = vmatprep.subr.bf16.mxu0 0
    %575 = vmatpush1.bf16.msra.mxu0 0
    %576 = vmatprep.subr.bf16.mxu0 0
    %577 = vmatpush1.bf16.msra.mxu0 0
    %578 = vmatprep.subr.bf16.mxu0 0
    %579 = vmatpush1.bf16.msra.mxu0 0
    %580 = vmatprep.subr.bf16.mxu0 0
    %581 = vmatpush1.bf16.msra.mxu0 0
    %582 = vmatprep.subr.bf16.mxu0 0
    %583 = vmatpush1.bf16.msra.mxu0 0
    %584 = vmatprep.subr.bf16.mxu0 0
    %585 = vmatpush1.bf16.msra.mxu0 0
    %586 = vmatprep.subr.bf16.mxu0 0
    %587 = vmatpush1.bf16.msra.mxu0 0
    %588 = vmatprep.subr.bf16.mxu0 0
    %589 = vmatpush1.bf16.msra.mxu0 0
    %590 = vmatprep.subr.bf16.mxu0 0
    %591 = vmatpush1.bf16.msra.mxu0 0
    %592 = vmatprep.subr.bf16.mxu0 0
    %593 = vmatpush1.bf16.msra.mxu0 0
    %594 = vmatprep.mubr.bf16.mxu0 0
    %595 = vmatmul.mubr.bf16.gmra.mrb[0].mxu0 %v560
    %v596 = vpop.f32.mrb[0].mxu0
    %v597 = vadd.f32 0.0, %v596
    %v598 = vpop.f32.mrb[0].mxu0
    %v599 = vadd.f32 0.0, %v598
    %v600 = vpop.f32.mrb[0].mxu0
    %v601 = vpop.f32.mrb[0].mxu0
    %602 = vdwg.mxu0
    %v605 = vrot.slane %v597, 4
    %v606 = vrot.slane %v599, 4
    %v609 = vadd.f32 %v203, %v605
    %v610 = vadd.f32 %v205, %v606
    %v611 = vxor.u32 %v609, 2147483648
    %v612 = vmul.f32 %v611, 1.442695
    %v613 = vpow.pop %v612
    %v614 = vadd.f32 %v613, 1.0
    %v615 = vrcp.pop %v614
    %v616 = vmul.f32 1.0, %v615
    %v617 = vtanh.pop %v610
    %v618 = vxor.u32 %v610, 2147483648
    %v619 = vmul.f32 %v618, 1.442695
    %v620 = vpow.pop %v619
    %v621 = vadd.f32 %v620, 1.0
    %v622 = vrcp.pop %v621
    %v623 = vmul.f32 1.0, %v622
    %v625 = vrot.slane %v543, 7
    %v627 = vmul.f32 %v616, %v625
    %v628 = vmul.f32 %v616, %v617
    %630 = vrot.lane.b32.xlu0 %v628, 64
    %v631 = vpop.permute.xlu0 %630
    %v633 = vadd.f32 %v627, %v631
    %v634 = vtanh.pop %v633
    %v635 = vmul.f32 %v623, %v634
    %637 = vrot.lane.b32.xlu0 %v635, 32
    %v638 = vpop.permute.xlu0 %637
    %vm640 = vcmask 258052
    %641 = vst.msk [vmem:[#allocation2 - $0x1] sm:$0x10] %vm640, %v638
    %v642 = vpack.c.bf16 %v635, %v635
    %v644 = vrot.slane %v642, 2
    %645 = vrot.lane.b32.xlu0 %v644, 64
    %v646 = vpop.permute.xlu0 %645
    %v648 = vsel %vm83, %v646, 0
    %650 = vmatprep.subr.bf16.mxu0 %v277
    %651 = vmatpush1.bf16.msra.mxu0 %v276
    %652 = vmatprep.subr.bf16.mxu0 %v279
    %653 = vmatpush1.bf16.msra.mxu0 %v278
    %654 = vmatprep.subr.bf16.mxu0 %v281
    %655 = vmatpush1.bf16.msra.mxu0 %v280
    %656 = vmatprep.subr.bf16.mxu0 %v283
    %657 = vmatpush1.bf16.msra.mxu0 %v282
    %658 = vmatprep.subr.bf16.mxu0 0
    %659 = vmatpush1.bf16.msra.mxu0 0
    %660 = vmatprep.subr.bf16.mxu0 0
    %661 = vmatpush1.bf16.msra.mxu0 0
    %662 = vmatprep.subr.bf16.mxu0 0
    %663 = vmatpush1.bf16.msra.mxu0 0
    %664 = vmatprep.subr.bf16.mxu0 0
    %665 = vmatpush1.bf16.msra.mxu0 0
    %666 = vmatprep.subr.bf16.mxu0 0
    %667 = vmatpush1.bf16.msra.mxu0 0
    %668 = vmatprep.subr.bf16.mxu0 0
    %669 = vmatpush1.bf16.msra.mxu0 0
    %670 = vmatprep.subr.bf16.mxu0 0
    %671 = vmatpush1.bf16.msra.mxu0 0
    %672 = vmatprep.subr.bf16.mxu0 0
    %673 = vmatpush1.bf16.msra.mxu0 0
    %674 = vmatprep.subr.bf16.mxu0 0
    %675 = vmatpush1.bf16.msra.mxu0 0
    %676 = vmatprep.subr.bf16.mxu0 0
    %677 = vmatpush1.bf16.msra.mxu0 0
    %678 = vmatprep.subr.bf16.mxu0 0
    %679 = vmatpush1.bf16.msra.mxu0 0
    %680 = vmatprep.subr.bf16.mxu0 0
    %681 = vmatpush1.bf16.msra.mxu0 0
    %682 = vmatprep.mubr.bf16.mxu0 0
    %683 = vmatmul.mubr.bf16.gmra.mrb[0].mxu0 %v648
    %v684 = vpop.f32.mrb[0].mxu0
    %v685 = vadd.f32 0.0, %v684
    %v686 = vpop.f32.mrb[0].mxu0
    %v687 = vadd.f32 0.0, %v686
    %v688 = vpop.f32.mrb[0].mxu0
    %v689 = vpop.f32.mrb[0].mxu0
    %690 = vdwg.mxu0
    %v693 = vrot.slane %v685, 3
    %v694 = vrot.slane %v687, 3
    %v697 = vadd.f32 %v203, %v693
    %v698 = vadd.f32 %v205, %v694
    %v699 = vxor.u32 %v697, 2147483648
    %v700 = vmul.f32 %v699, 1.442695
    %v701 = vpow.pop %v700
    %v702 = vadd.f32 %v701, 1.0
    %v703 = vrcp.pop %v702
    %v704 = vmul.f32 1.0, %v703
    %v705 = vtanh.pop %v698
    %v706 = vxor.u32 %v698, 2147483648
    %v707 = vmul.f32 %v706, 1.442695
    %v708 = vpow.pop %v707
    %v709 = vadd.f32 %v708, 1.0
    %v710 = vrcp.pop %v709
    %v711 = vmul.f32 1.0, %v710
    %v713 = vrot.slane %v633, 7
    %v715 = vmul.f32 %v704, %v713
    %v716 = vmul.f32 %v704, %v705
    %718 = vrot.lane.b32.xlu0 %v716, 64
    %v719 = vpop.permute.xlu0 %718
    %v721 = vadd.f32 %v715, %v719
    %v722 = vtanh.pop %v721
    %v723 = vmul.f32 %v711, %v722
    %725 = vrot.lane.b32.xlu0 %v723, 32
    %v726 = vpop.permute.xlu0 %725
    %vm728 = vcmask 259077
    %729 = vst.msk [vmem:[#allocation2 - $0x1] sm:$0x20] %vm728, %v726
    %v730 = vpack.c.bf16 %v723, %v723
    %v732 = vshrl.u32 %v730, 16
    %v734 = vrot.slane %v732, 2
    %735 = vrot.lane.b32.xlu0 %v734, 64
    %v736 = vpop.permute.xlu0 %735
    %v738 = vsel %vm83, %v736, 0
    %740 = vmatprep.subr.bf16.mxu0 %v277
    %741 = vmatpush1.bf16.msra.mxu0 %v276
    %742 = vmatprep.subr.bf16.mxu0 %v279
    %743 = vmatpush1.bf16.msra.mxu0 %v278
    %744 = vmatprep.subr.bf16.mxu0 %v281
    %745 = vmatpush1.bf16.msra.mxu0 %v280
    %746 = vmatprep.subr.bf16.mxu0 %v283
    %747 = vmatpush1.bf16.msra.mxu0 %v282
    %748 = vmatprep.subr.bf16.mxu0 0
    %749 = vmatpush1.bf16.msra.mxu0 0
    %750 = vmatprep.subr.bf16.mxu0 0
    %751 = vmatpush1.bf16.msra.mxu0 0
    %752 = vmatprep.subr.bf16.mxu0 0
    %753 = vmatpush1.bf16.msra.mxu0 0
    %754 = vmatprep.subr.bf16.mxu0 0
    %755 = vmatpush1.bf16.msra.mxu0 0
    %756 = vmatprep.subr.bf16.mxu0 0
    %757 = vmatpush1.bf16.msra.mxu0 0
    %758 = vmatprep.subr.bf16.mxu0 0
    %759 = vmatpush1.bf16.msra.mxu0 0
    %760 = vmatprep.subr.bf16.mxu0 0
    %761 = vmatpush1.bf16.msra.mxu0 0
    %762 = vmatprep.subr.bf16.mxu0 0
    %763 = vmatpush1.bf16.msra.mxu0 0
    %764 = vmatprep.subr.bf16.mxu0 0
    %765 = vmatpush1.bf16.msra.mxu0 0
    %766 = vmatprep.subr.bf16.mxu0 0
    %767 = vmatpush1.bf16.msra.mxu0 0
    %768 = vmatprep.subr.bf16.mxu0 0
    %769 = vmatpush1.bf16.msra.mxu0 0
    %770 = vmatprep.subr.bf16.mxu0 0
    %771 = vmatpush1.bf16.msra.mxu0 0
    %772 = vmatprep.mubr.bf16.mxu0 0
    %773 = vmatmul.mubr.bf16.gmra.mrb[0].mxu0 %v738
    %v774 = vpop.f32.mrb[0].mxu0
    %v775 = vadd.f32 0.0, %v774
    %v776 = vpop.f32.mrb[0].mxu0
    %v777 = vadd.f32 0.0, %v776
    %v778 = vpop.f32.mrb[0].mxu0
    %v779 = vpop.f32.mrb[0].mxu0
    %780 = vdwg.mxu0
    %v783 = vrot.slane %v775, 2
    %v784 = vrot.slane %v777, 2
    %v787 = vadd.f32 %v203, %v783
    %v788 = vadd.f32 %v205, %v784
    %v789 = vxor.u32 %v787, 2147483648
    %v790 = vmul.f32 %v789, 1.442695
    %v791 = vpow.pop %v790
    %v792 = vadd.f32 %v791, 1.0
    %v793 = vrcp.pop %v792
    %v794 = vmul.f32 1.0, %v793
    %v795 = vtanh.pop %v788
    %v796 = vxor.u32 %v788, 2147483648
    %v797 = vmul.f32 %v796, 1.442695
    %v798 = vpow.pop %v797
    %v799 = vadd.f32 %v798, 1.0
    %v800 = vrcp.pop %v799
    %v801 = vmul.f32 1.0, %v800
    %v803 = vrot.slane %v721, 7
    %v805 = vmul.f32 %v794, %v803
    %v806 = vmul.f32 %v794, %v795
    %808 = vrot.lane.b32.xlu0 %v806, 64
    %v809 = vpop.permute.xlu0 %808
    %v811 = vadd.f32 %v805, %v809
    %v812 = vtanh.pop %v811
    %v813 = vmul.f32 %v801, %v812
    %815 = vrot.lane.b32.xlu0 %v813, 32
    %v816 = vpop.permute.xlu0 %815
    %vm818 = vcmask 260102
    %819 = vst.msk [vmem:[#allocation2 - $0x1] sm:$0x40] %vm818, %v816
    %v820 = vpack.c.bf16 %v813, %v813
    %v822 = vrot.slane %v820, 3
    %823 = vrot.lane.b32.xlu0 %v822, 64
    %v824 = vpop.permute.xlu0 %823
    %v826 = vsel %vm83, %v824, 0
    %828 = vmatprep.subr.bf16.mxu0 %v277
    %829 = vmatpush1.bf16.msra.mxu0 %v276
    %830 = vmatprep.subr.bf16.mxu0 %v279
    %831 = vmatpush1.bf16.msra.mxu0 %v278
    %832 = vmatprep.subr.bf16.mxu0 %v281
    %833 = vmatpush1.bf16.msra.mxu0 %v280
    %834 = vmatprep.subr.bf16.mxu0 %v283
    %835 = vmatpush1.bf16.msra.mxu0 %v282
    %836 = vmatprep.subr.bf16.mxu0 0
    %837 = vmatpush1.bf16.msra.mxu0 0
    %838 = vmatprep.subr.bf16.mxu0 0
    %839 = vmatpush1.bf16.msra.mxu0 0
    %840 = vmatprep.subr.bf16.mxu0 0
    %841 = vmatpush1.bf16.msra.mxu0 0
    %842 = vmatprep.subr.bf16.mxu0 0
    %843 = vmatpush1.bf16.msra.mxu0 0
    %844 = vmatprep.subr.bf16.mxu0 0
    %845 = vmatpush1.bf16.msra.mxu0 0
    %846 = vmatprep.subr.bf16.mxu0 0
    %847 = vmatpush1.bf16.msra.mxu0 0
    %848 = vmatprep.subr.bf16.mxu0 0
    %849 = vmatpush1.bf16.msra.mxu0 0
    %850 = vmatprep.subr.bf16.mxu0 0
    %851 = vmatpush1.bf16.msra.mxu0 0
    %852 = vmatprep.subr.bf16.mxu0 0
    %853 = vmatpush1.bf16.msra.mxu0 0
    %854 = vmatprep.subr.bf16.mxu0 0
    %855 = vmatpush1.bf16.msra.mxu0 0
    %856 = vmatprep.subr.bf16.mxu0 0
    %857 = vmatpush1.bf16.msra.mxu0 0
    %858 = vmatprep.subr.bf16.mxu0 0
    %859 = vmatpush1.bf16.msra.mxu0 0
    %860 = vmatprep.mubr.bf16.mxu0 0
    %861 = vmatmul.mubr.bf16.gmra.mrb[0].mxu0 %v826
    %v862 = vpop.f32.mrb[0].mxu0
    %v863 = vadd.f32 0.0, %v862
    %v864 = vpop.f32.mrb[0].mxu0
    %v865 = vadd.f32 0.0, %v864
    %v866 = vpop.f32.mrb[0].mxu0
    %v867 = vpop.f32.mrb[0].mxu0
    %868 = vdwg.mxu0
    %v871 = vrot.slane %v863, 1
    %v872 = vrot.slane %v865, 1
    %v875 = vadd.f32 %v203, %v871
    %v876 = vadd.f32 %v205, %v872
    %v877 = vxor.u32 %v875, 2147483648
    %v878 = vmul.f32 %v877, 1.442695
    %v879 = vpow.pop %v878
    %v880 = vadd.f32 %v879, 1.0
    %v881 = vrcp.pop %v880
    %v882 = vmul.f32 1.0, %v881
    %v883 = vtanh.pop %v876
    %v884 = vxor.u32 %v876, 2147483648
    %v885 = vmul.f32 %v884, 1.442695
    %v886 = vpow.pop %v885
    %v887 = vadd.f32 %v886, 1.0
    %v888 = vrcp.pop %v887
    %v889 = vmul.f32 1.0, %v888
    %v891 = vrot.slane %v811, 7
    %v893 = vmul.f32 %v882, %v891
    %v894 = vmul.f32 %v882, %v883
    %896 = vrot.lane.b32.xlu0 %v894, 64
    %v897 = vpop.permute.xlu0 %896
    %v899 = vadd.f32 %v893, %v897
    %v900 = vtanh.pop %v899
    %v901 = vmul.f32 %v889, %v900
    %903 = vrot.lane.b32.xlu0 %v901, 32
    %v904 = vpop.permute.xlu0 %903
    %vm906 = vcmask 261127
    %907 = vst.msk [vmem:[#allocation2 - $0x1] sm:$0x80] %vm906, %v904
    %v908 = vpack.c.bf16 %v901, %v901
    %v910 = vshrl.u32 %v908, 16
    %v912 = vrot.slane %v910, 3
    %913 = vrot.lane.b32.xlu0 %v912, 64
    %v914 = vpop.permute.xlu0 %913
    %v916 = vsel %vm83, %v914, 0
    %918 = vmatprep.subr.bf16.mxu0 %v277
    %919 = vmatpush1.bf16.msra.mxu0 %v276
    %920 = vmatprep.subr.bf16.mxu0 %v279
    %921 = vmatpush1.bf16.msra.mxu0 %v278
    %922 = vmatprep.subr.bf16.mxu0 %v281
    %923 = vmatpush1.bf16.msra.mxu0 %v280
    %924 = vmatprep.subr.bf16.mxu0 %v283
    %925 = vmatpush1.bf16.msra.mxu0 %v282
    %926 = vmatprep.subr.bf16.mxu0 0
    %927 = vmatpush1.bf16.msra.mxu0 0
    %928 = vmatprep.subr.bf16.mxu0 0
    %929 = vmatpush1.bf16.msra.mxu0 0
    %930 = vmatprep.subr.bf16.mxu0 0
    %931 = vmatpush1.bf16.msra.mxu0 0
    %932 = vmatprep.subr.bf16.mxu0 0
    %933 = vmatpush1.bf16.msra.mxu0 0
    %934 = vmatprep.subr.bf16.mxu0 0
    %935 = vmatpush1.bf16.msra.mxu0 0
    %936 = vmatprep.subr.bf16.mxu0 0
    %937 = vmatpush1.bf16.msra.mxu0 0
    %938 = vmatprep.subr.bf16.mxu0 0
    %939 = vmatpush1.bf16.msra.mxu0 0
    %940 = vmatprep.subr.bf16.mxu0 0
    %941 = vmatpush1.bf16.msra.mxu0 0
    %942 = vmatprep.subr.bf16.mxu0 0
    %943 = vmatpush1.bf16.msra.mxu0 0
    %944 = vmatprep.subr.bf16.mxu0 0
    %945 = vmatpush1.bf16.msra.mxu0 0
    %946 = vmatprep.subr.bf16.mxu0 0
    %947 = vmatpush1.bf16.msra.mxu0 0
    %948 = vmatprep.subr.bf16.mxu0 0
    %949 = vmatpush1.bf16.msra.mxu0 0
    %950 = vmatprep.mubr.bf16.mxu0 0
    %951 = vmatmul.mubr.bf16.gmra.mrb[0].mxu0 %v916
    %v952 = vpop.f32.mrb[0].mxu0
    %v953 = vadd.f32 0.0, %v952
    %v954 = vpop.f32.mrb[0].mxu0
    %v955 = vadd.f32 0.0, %v954
    %v956 = vpop.f32.mrb[0].mxu0
    %v957 = vpop.f32.mrb[0].mxu0
    %958 = vdwg.mxu0
    %v961 = vrot.slane %v953, 1
    %v962 = vrot.slane %v955, 1
    %v965 = vadd.f32 %v203, %v961
    %v966 = vadd.f32 %v205, %v962
    %v967 = vxor.u32 %v965, 2147483648
    %v968 = vmul.f32 %v967, 1.442695
    %v969 = vpow.pop %v968
    %v970 = vadd.f32 %v969, 1.0
    %v971 = vrcp.pop %v970
    %v972 = vmul.f32 1.0, %v971
    %v973 = vtanh.pop %v966
    %v974 = vxor.u32 %v966, 2147483648
    %v975 = vmul.f32 %v974, 1.442695
    %v976 = vpow.pop %v975
    %v977 = vadd.f32 %v976, 1.0
    %v978 = vrcp.pop %v977
    %v979 = vmul.f32 1.0, %v978
    %v980 = vmul.f32 %v972, %v899
    %v981 = vmul.f32 %v972, %v973
    %983 = vrot.lane.b32.xlu0 %v981, 64
    %v984 = vpop.permute.xlu0 %983
    %v986 = vadd.f32 %v980, %v984
    %v987 = vtanh.pop %v986
    %v988 = vmul.f32 %v979, %v987
    %990 = vrot.lane.b32.xlu0 %v988, 32
    %v991 = vpop.permute.xlu0 %990
    %993 = vst.msk [vmem:[#allocation2] sm:$0x80] %vm906, %v991
    %v994 = vld [vmem:[#allocation2] sm:$0xff]
    %v995 = vpack.c.bf16 %v994, %v994
    %v996 = vld [vmem:[%s5] sm:$0xf]
    %v997 = vld [vmem:[%s5 + $0x4] sm:$0xf]
    %v998 = vld [vmem:[%s5 + $0x8] sm:$0xf]
    %v999 = vld [vmem:[%s5 + $0xc] sm:$0xf]
    %v1000 = vld [vmem:[%s6] sm:$0x1]
    %v1002 = vlaneseq
    %v1003 = vshrl.u32 %v1002, 7
    %v1004 = vsub.s32 0, %v1003
    %v1005 = vrot.slane %v1000, %v1004
    %v1011 = vunpack.c.l.b16 %v996
    %v1012 = vunpack.c.l.b16 %v997
    %v1013 = vunpack.c.l.b16 %v998
    %v1014 = vunpack.c.l.b16 %v999
    %v1015 = vpack.c.b16 %v1012, %v1011
    %v1016 = vpack.c.b16 %v1014, %v1013
    %v1020 = vsel %vm164, %v995, 0
    %1022 = vmatprep.subr.bf16.mxu0 0
    %1023 = vmatpush1.bf16.msra.mxu0 %v1015
    %1024 = vmatprep.subr.bf16.mxu0 0
    %1025 = vmatpush1.bf16.msra.mxu0 %v1016
    %1026 = vmatprep.subr.bf16.mxu0 0
    %1027 = vmatpush1.bf16.msra.mxu0 0
    %1028 = vmatprep.subr.bf16.mxu0 0
    %1029 = vmatpush1.bf16.msra.mxu0 0
    %1030 = vmatprep.subr.bf16.mxu0 0
    %1031 = vmatpush1.bf16.msra.mxu0 0
    %1032 = vmatprep.subr.bf16.mxu0 0
    %1033 = vmatpush1.bf16.msra.mxu0 0
    %1034 = vmatprep.subr.bf16.mxu0 0
    %1035 = vmatpush1.bf16.msra.mxu0 0
    %1036 = vmatprep.subr.bf16.mxu0 0
    %1037 = vmatpush1.bf16.msra.mxu0 0
    %1038 = vmatprep.subr.bf16.mxu0 0
    %1039 = vmatpush1.bf16.msra.mxu0 0
    %1040 = vmatprep.subr.bf16.mxu0 0
    %1041 = vmatpush1.bf16.msra.mxu0 0
    %1042 = vmatprep.subr.bf16.mxu0 0
    %1043 = vmatpush1.bf16.msra.mxu0 0
    %1044 = vmatprep.subr.bf16.mxu0 0
    %1045 = vmatpush1.bf16.msra.mxu0 0
    %1046 = vmatprep.subr.bf16.mxu0 0
    %1047 = vmatpush1.bf16.msra.mxu0 0
    %1048 = vmatprep.subr.bf16.mxu0 0
    %1049 = vmatpush1.bf16.msra.mxu0 0
    %1050 = vmatprep.subr.bf16.mxu0 0
    %1051 = vmatpush1.bf16.msra.mxu0 0
    %1052 = vmatprep.subr.bf16.mxu0 0
    %1053 = vmatpush1.bf16.msra.mxu0 0
    %1054 = vmatprep.mubr.bf16.mxu0 0
    %1055 = vmatmul.mubr.bf16.gmra.mrb[0].mxu0 %v1020
    %v1056 = vpop.f32.mrb[0].mxu0
    %v1057 = vadd.f32 %v1005, %v1056
    %v1058 = vpop.f32.mrb[0].mxu0
    %v1059 = vpop.f32.mrb[0].mxu0
    %v1060 = vpop.f32.mrb[0].mxu0
    %1061 = vdwg.mxu0
    %v1062 = vmax.f32 %v1057, 0.0
    %vm1063 = vcmp.lt.s32.totalorder %v44, 64
    %v1064 = vsel %vm1063, %v1062, -1e+30
    %1065 = vmax.xlane.f32.xlu0 %v1064
    %v1066 = vpop.xlane.xlu0 %1065
    %v1067 = vsub.f32 %v1064, %v1066
    %v1068 = vmul.f32 %v1067, 1.442695
    %v1069 = vpow.pop %v1068
    %1070 = vadd.xlane.f32.xlu0 %v1069
    %v1071 = vpop.xlane.xlu0 %1070
    %v1072 = vlog2.pop %v1071
    %v1073 = vmul.f32 %v1072, 0.6931472
    %v1074 = vsub.f32 %v1067, %v1073
    %1075 = vst [vmem:[#allocation6] sm:$0xff] %v1074
    // Predicated region
    $region34: #{rnn_model_forward.1} parent=1 // pred_check
      _
    $region35: #{rnn_model_forward.1} parent=1 // pred_check_branch
      %1077 = sbr.rel (0) target = $region37
    $region36: #{rnn_model_forward.1} parent=1 // pred_region
      %s1079 = ssub.s32 128, 128
      %1080 = vsyncadd [#allocation5], %s1079
      %s1082 = sshll.u32 [#allocation6], 4
      %s1083 = int_to_ptr.vmem [resolvable:$true] %s1082
      %1085 = dma.vmem_to_hbm [thread:$0]  %s1083, 128, %s7, [#allocation5]
    $region37: #{rnn_model_forward.1} parent=1 // pred_fallthru
      _
    // Predicated region
    $region38: #{rnn_model_forward.1} parent=1 // pred_check
      _
    $region39: #{rnn_model_forward.1} parent=1 // pred_check_branch
      %1087 = sbr.rel (0) target = $region41
    $region40: #{rnn_model_forward.1} parent=1 // pred_region
      %1088 = dma.done [#allocation5], 128
    $region41: #{rnn_model_forward.1} parent=1 // pred_fallthru
      _
    %1089 = vsyncpa [#allocation4], 1
    %1090 = vsyncpa [#allocation5], 1

</llo_original>
